<compile_context>
chip_gen: v6e
topology: v6e:2x2x1
jax: 0.10.0
libtpu: 0.0.40
codegen_flags: <defaults>
</compile_context>

<pallas_src>
import jax
import jax.numpy as jnp
from jax.experimental import pallas as pl
from jax.experimental.pallas import tpu as pltpu


# ----------------------------------------------------------------------------- kernel


def _make_lstm_kernel(seq_len, b_pad, d_pad, hid):
    """Per-layer LSTM kernel for static (T, B_pad, D_pad, H). All refs are 2-D/3-D VMEM."""
    four_h = 4 * hid

    def kernel(x_ref, wih_ref, whh_ref, b_ref,      # inputs
               hid_ref, cell_ref,                   # outputs (this layer's block)
               seq_ref, gate_ref):                  # scratch (persist across layers)
        wih = wih_ref[0]                            # (D_pad, 4H)
        whh = whh_ref[0]                            # (H, 4H)
        b = b_ref[0]                                # (1, 4H) = b_ih + b_hh (pre-folded)

        # ---- Batched input projection, hoisted out of the time loop ----------------
        # Layer 0 reads the padded input sequence; layers >= 1 read the previous
        # layer's outputs from the persistent seq scratch (dropout = identity, eval).
        @pl.when(pl.program_id(0) == 0)
        def _():
            gate_ref[...] = (
                jnp.dot(x_ref[...], wih, preferred_element_type=jnp.float32) + b)

        @pl.when(pl.program_id(0) > 0)
        def _():
            # Only the first H rows of W_ih are meaningful for layers >= 1.
            gate_ref[...] = (
                jnp.dot(seq_ref[...], wih[:hid, :],
                        preferred_element_type=jnp.float32) + b)

        # ---- Serial recurrence: h/c carried as register values ---------------------
        h = jnp.zeros((b_pad, hid), jnp.float32)
        c = jnp.zeros((b_pad, hid), jnp.float32)
        for t in range(seq_len):                    # static unrolled time loop (T small)
            g_in = gate_ref[t * b_pad:(t + 1) * b_pad, :]       # (B_pad, 4H)
            if t == 0:
                gates = g_in                        # h0 == 0 -> recurrent term vanishes
            else:
                gates = jnp.dot(h, whh, preferred_element_type=jnp.float32) + g_in

            # PyTorch gate order: i, f, g, o
            i_g = jax.nn.sigmoid(gates[:, 0 * hid:1 * hid])
            f_g = jax.nn.sigmoid(gates[:, 1 * hid:2 * hid])
            g_g = jnp.tanh(gates[:, 2 * hid:3 * hid])
            o_g = jax.nn.sigmoid(gates[:, 3 * hid:4 * hid])

            c = f_g * c + i_g * g_g
            h = o_g * jnp.tanh(c)

            # This layer's output becomes the next layer's input.
            seq_ref[t * b_pad:(t + 1) * b_pad, :] = h

        hid_ref[0] = h
        cell_ref[0] = c

    return kernel


# ----------------------------------------------------------------------------- params


def init_lstm_params(key, input_dim, hidden_dim, num_layers):
    """PyTorch-style nn.LSTM parameters (uniform(-1/sqrt(H), 1/sqrt(H)))."""
    bound = 1.0 / float(hidden_dim) ** 0.5
    keys = jax.random.split(key, num_layers * 4)
    params = {}
    for l in range(num_layers):
        d_in = input_dim if l == 0 else hidden_dim
        k0, k1, k2, k3 = keys[4 * l:4 * l + 4]
        params[f'w_ih_l{l}'] = jax.random.uniform(
            k0, (4 * hidden_dim, d_in), jnp.float32, -bound, bound)
        params[f'w_hh_l{l}'] = jax.random.uniform(
            k1, (4 * hidden_dim, hidden_dim), jnp.float32, -bound, bound)
        params[f'b_ih_l{l}'] = jax.random.uniform(
            k2, (4 * hidden_dim,), jnp.float32, -bound, bound)
        params[f'b_hh_l{l}'] = jax.random.uniform(
            k3, (4 * hidden_dim,), jnp.float32, -bound, bound)
    return params


def prepare_params(params, input_dim, hidden_dim, num_layers):
    """One-time weight prep (hoisted out of the forward path): transpose, fold the two
    biases, zero-pad the input axis to D_pad = max(input_dim, hidden_dim), stack layers.
    (The kernel slices W_ih[:H] for layers >= 1, so the pad rows are never read there.)"""
    d_pad = max(input_dim, hidden_dim)
    w_ih_list, w_hh_list, b_list = [], [], []
    for l in range(num_layers):
        w_ih_t = params[f'w_ih_l{l}'].T                      # (D_in, 4H)
        pad_rows = d_pad - w_ih_t.shape[0]
        if pad_rows:
            w_ih_t = jnp.pad(w_ih_t, ((0, pad_rows), (0, 0)))
        w_ih_list.append(w_ih_t)
        w_hh_list.append(params[f'w_hh_l{l}'].T)             # (H, 4H)
        b_list.append((params[f'b_ih_l{l}'] + params[f'b_hh_l{l}']).reshape(1, -1))
    return (jnp.stack(w_ih_list),                            # (L, D_pad, 4H)
            jnp.stack(w_hh_list),                            # (L, H, 4H)
            jnp.stack(b_list))                               # (L, 1, 4H)


# ----------------------------------------------------------------------------- forward


def encoder_forward(x, prepared):
    """x: (B, T, input_dim) f32 -> (hidden, cell), each (num_layers, B, hidden_dim)."""
    w_ih_all, w_hh_all, b_all = prepared
    num_layers, d_pad, four_h = w_ih_all.shape
    hidden_dim = four_h // 4
    B, T, D = x.shape
    b_pad = max(8, ((B + 7) // 8) * 8)

    # (B, T, D) -> (T*B_pad, D_pad): time-major, batch padded to full sublanes.
    xk = jnp.transpose(x.astype(jnp.float32), (1, 0, 2))
    xk = jnp.pad(xk, ((0, 0), (0, b_pad - B), (0, d_pad - D)))
    xk = xk.reshape(T * b_pad, d_pad)

    kernel = _make_lstm_kernel(T, b_pad, d_pad, hidden_dim)

    hidden, cell = pl.pallas_call(
        kernel,
        grid=(num_layers,),
        in_specs=[
            pl.BlockSpec((T * b_pad, d_pad), lambda l: (0, 0)),              # x (resident)
            pl.BlockSpec((1, d_pad, four_h), lambda l: (l, 0, 0)),           # W_ih (per layer)
            pl.BlockSpec((1, hidden_dim, four_h), lambda l: (l, 0, 0)),      # W_hh (per layer)
            pl.BlockSpec((1, 1, four_h), lambda l: (l, 0, 0)),               # bias (per layer)
        ],
        out_specs=[
            pl.BlockSpec((1, b_pad, hidden_dim), lambda l: (l, 0, 0)),       # hidden
            pl.BlockSpec((1, b_pad, hidden_dim), lambda l: (l, 0, 0)),       # cell
        ],
        out_shape=(
            jax.ShapeDtypeStruct((num_layers, b_pad, hidden_dim), jnp.float32),
            jax.ShapeDtypeStruct((num_layers, b_pad, hidden_dim), jnp.float32),
        ),
        scratch_shapes=[
            pltpu.VMEM((T * b_pad, hidden_dim), jnp.float32),   # layer-to-layer seq buffer
            pltpu.VMEM((T * b_pad, four_h), jnp.float32),       # precomputed x@W_ih + b
        ],
        compiler_params=pltpu.CompilerParams(
            dimension_semantics=("arbitrary",)),                # layers are sequential
    )(xk, w_ih_all, w_hh_all, b_all)

    return hidden[:, :B, :], cell[:, :B, :]


# ----------------------------------------------------------------------------- reference


def reference_encoder(x, params, hidden_dim, num_layers):
    """Pure-JAX replica of the PyTorch Encoder (eval mode)."""
    P = jax.lax.Precision.HIGHEST
    B, T, _ = x.shape
    layer_in = x
    h_last, c_last = [], []
    for l in range(num_layers):
        w_ih = params[f'w_ih_l{l}']
        w_hh = params[f'w_hh_l{l}']
        b = params[f'b_ih_l{l}'] + params[f'b_hh_l{l}']
        h = jnp.zeros((B, hidden_dim), jnp.float32)
        c = jnp.zeros((B, hidden_dim), jnp.float32)
        outs = []
        for t in range(T):
            g = (jnp.dot(layer_in[:, t, :], w_ih.T, precision=P)
                 + jnp.dot(h, w_hh.T, precision=P) + b)
            i_g = jax.nn.sigmoid(g[:, :hidden_dim])
            f_g = jax.nn.sigmoid(g[:, hidden_dim:2 * hidden_dim])
            g_g = jnp.tanh(g[:, 2 * hidden_dim:3 * hidden_dim])
            o_g = jax.nn.sigmoid(g[:, 3 * hidden_dim:])
            c = f_g * c + i_g * g_g
            h = o_g * jnp.tanh(c)
            outs.append(h)
        layer_in = jnp.stack(outs, axis=1)     # inter-layer dropout: identity in eval
        h_last.append(h)
        c_last.append(c)
    return jnp.stack(h_last), jnp.stack(c_last)


# ----------------------------------------------------------------------------- main


if __name__ == "__main__":
    B, T, INPUT_DIM, HIDDEN_DIM, NUM_LAYERS = 2, 8, 16, 32, 2

    key = jax.random.PRNGKey(0)
    pkey, xkey = jax.random.split(key)
    params = init_lstm_params(pkey, INPUT_DIM, HIDDEN_DIM, NUM_LAYERS)
    x = jax.random.normal(xkey, (B, T, INPUT_DIM), jnp.float32)

    prepared = prepare_params(params, INPUT_DIM, HIDDEN_DIM, NUM_LAYERS)

    hidden, cell = jax.jit(encoder_forward)(x, prepared)
    hidden = jax.block_until_ready(hidden)
    cell = jax.block_until_ready(cell)

    h_ref, c_ref = reference_encoder(x, params, HIDDEN_DIM, NUM_LAYERS)

    assert hidden.shape == (NUM_LAYERS, B, HIDDEN_DIM), hidden.shape
    assert cell.shape == (NUM_LAYERS, B, HIDDEN_DIM), cell.shape
    assert jnp.allclose(hidden, h_ref, atol=2e-3, rtol=2e-3), (hidden, h_ref)
    assert jnp.allclose(cell, c_ref, atol=2e-3, rtol=2e-3), (cell, c_ref)
    print("KERNEL_OK")
</pallas_src>

<mosaic_0001>
module attributes {stable_mosaic.version = 11 : i64} {
  func.func @kernel(%arg0: i32, %arg1: memref<64x32xf32, #tpu.memory_space<vmem>>, %arg2: memref<1x32x128xf32, #tpu.memory_space<vmem>>, %arg3: memref<1x32x128xf32, #tpu.memory_space<vmem>>, %arg4: memref<1x1x128xf32, #tpu.memory_space<vmem>>, %arg5: memref<1x8x32xf32, #tpu.memory_space<vmem>>, %arg6: memref<1x8x32xf32, #tpu.memory_space<vmem>>, %arg7: memref<64x32xf32, #tpu.memory_space<vmem>>, %arg8: memref<64x128xf32, #tpu.memory_space<vmem>>) attributes {dimension_semantics = [#tpu.dimension_semantics<arbitrary>], iteration_bounds = array<i64: 2>, scalar_prefetch = 0 : i64, scratch_operands = 2 : i64, tpu.core_type = #tpu.core_type<tc>, window_params = [{pipeline_mode = #tpu.pipeline_mode<synchronous>, transform_indices = @transform_0, window_bounds = array<i64: 64, 32>}, {transform_indices = @transform_1, window_bounds = array<i64: 1, 32, 128>}, {transform_indices = @transform_2, window_bounds = array<i64: 1, 32, 128>}, {transform_indices = @transform_3, window_bounds = array<i64: 1, 1, 128>}, {transform_indices = @transform_4, window_bounds = array<i64: 1, 8, 32>}, {transform_indices = @transform_5, window_bounds = array<i64: 1, 8, 32>}]} {
    %c0 = arith.constant 0 : index
    %c0_0 = arith.constant 0 : index
    %c0_1 = arith.constant 0 : index
    %0 = vector.load %arg2[%c0, %c0_0, %c0_1] : memref<1x32x128xf32, #tpu.memory_space<vmem>>, vector<1x32x128xf32>
    %1 = vector.shape_cast %0 : vector<1x32x128xf32> to vector<32x128xf32>
    %c0_2 = arith.constant 0 : index
    %c0_3 = arith.constant 0 : index
    %c0_4 = arith.constant 0 : index
    %2 = vector.load %arg3[%c0_2, %c0_3, %c0_4] : memref<1x32x128xf32, #tpu.memory_space<vmem>>, vector<1x32x128xf32>
    %3 = vector.shape_cast %2 : vector<1x32x128xf32> to vector<32x128xf32>
    %c0_5 = arith.constant 0 : index
    %c0_6 = arith.constant 0 : index
    %c0_7 = arith.constant 0 : index
    %4 = vector.load %arg4[%c0_5, %c0_6, %c0_7] : memref<1x1x128xf32, #tpu.memory_space<vmem>>, vector<1x1x128xf32>
    %5 = vector.shape_cast %4 : vector<1x1x128xf32> to vector<1x128xf32>
    %c0_i32 = arith.constant 0 : i32
    %6 = arith.cmpi eq, %arg0, %c0_i32 : i32
    %7 = arith.extui %6 : i1 to i32
    %c0_i32_8 = arith.constant 0 : i32
    %8 = arith.cmpi ne, %7, %c0_i32_8 : i32
    scf.if %8 {
      %c0_73 = arith.constant 0 : index
      %c0_74 = arith.constant 0 : index
      %249 = vector.load %arg1[%c0_73, %c0_74] : memref<64x32xf32, #tpu.memory_space<vmem>>, vector<64x32xf32>
      %cst_75 = arith.constant dense<0.000000e+00> : vector<64x128xf32>
      %250 = tpu.matmul %249, %1, %cst_75 {dimension_numbers = #tpu.dot_dimension_numbers<[1], [0], [0], [1], [0, 0, 1, 1], [], []>} : vector<64x32xf32>, vector<32x128xf32>, vector<64x128xf32> -> vector<64x128xf32>
      %251 = vector.broadcast %5 : vector<1x128xf32> to vector<64x128xf32>
      %252 = arith.addf %250, %251 : vector<64x128xf32>
      %c0_76 = arith.constant 0 : index
      %c0_77 = arith.constant 0 : index
      %253 = vector.load %arg8[%c0_76, %c0_77] : memref<64x128xf32, #tpu.memory_space<vmem>>, vector<64x128xf32>
      tpu.vector_store %arg8[%c0_76, %c0_77], %252 {strides = array<i32>} : memref<64x128xf32, #tpu.memory_space<vmem>>, vector<64x128xf32>,
    } else {
    }
    %c0_i32_9 = arith.constant 0 : i32
    %9 = arith.cmpi sgt, %arg0, %c0_i32_9 : i32
    %10 = arith.extui %9 : i1 to i32
    %c0_i32_10 = arith.constant 0 : i32
    %11 = arith.cmpi ne, %10, %c0_i32_10 : i32
    scf.if %11 {
      %c0_73 = arith.constant 0 : index
      %c0_74 = arith.constant 0 : index
      %249 = vector.load %arg7[%c0_73, %c0_74] : memref<64x32xf32, #tpu.memory_space<vmem>>, vector<64x32xf32>
      %cst_75 = arith.constant dense<0.000000e+00> : vector<64x128xf32>
      %250 = tpu.matmul %249, %1, %cst_75 {dimension_numbers = #tpu.dot_dimension_numbers<[1], [0], [0], [1], [0, 0, 1, 1], [], []>} : vector<64x32xf32>, vector<32x128xf32>, vector<64x128xf32> -> vector<64x128xf32>
      %251 = vector.broadcast %5 : vector<1x128xf32> to vector<64x128xf32>
      %252 = arith.addf %250, %251 : vector<64x128xf32>
      %c0_76 = arith.constant 0 : index
      %c0_77 = arith.constant 0 : index
      %253 = vector.load %arg8[%c0_76, %c0_77] : memref<64x128xf32, #tpu.memory_space<vmem>>, vector<64x128xf32>
      tpu.vector_store %arg8[%c0_76, %c0_77], %252 {strides = array<i32>} : memref<64x128xf32, #tpu.memory_space<vmem>>, vector<64x128xf32>,
    } else {
    }
    %cst = arith.constant 0.000000e+00 : f32
    %12 = vector.broadcast %cst : f32 to vector<8x32xf32>
    %c0_11 = arith.constant 0 : index
    %c0_12 = arith.constant 0 : index
    %13 = vector.load %arg8[%c0_11, %c0_12] : memref<64x128xf32, #tpu.memory_space<vmem>>, vector<8x128xf32>
    %14 = vector.extract_strided_slice %13 {offsets = [0, 0], sizes = [8, 32], strides = [1, 1]} : vector<8x128xf32> to vector<8x32xf32>
    %15 = arith.negf %14 : vector<8x32xf32>
    %16 = math.exp %15 : vector<8x32xf32>
    %cst_13 = arith.constant 1.000000e+00 : f32
    %17 = vector.broadcast %cst_13 : f32 to vector<8x32xf32>
    %18 = arith.addf %17, %16 : vector<8x32xf32>
    %19 = arith.divf %17, %18 : vector<8x32xf32>
    %20 = vector.extract_strided_slice %13 {offsets = [0, 32], sizes = [8, 32], strides = [1, 1]} : vector<8x128xf32> to vector<8x32xf32>
    %21 = arith.negf %20 : vector<8x32xf32>
    %22 = math.exp %21 : vector<8x32xf32>
    %cst_14 = arith.constant 1.000000e+00 : f32
    %23 = vector.broadcast %cst_14 : f32 to vector<8x32xf32>
    %24 = arith.addf %23, %22 : vector<8x32xf32>
    %25 = arith.divf %23, %24 : vector<8x32xf32>
    %26 = vector.extract_strided_slice %13 {offsets = [0, 64], sizes = [8, 32], strides = [1, 1]} : vector<8x128xf32> to vector<8x32xf32>
    %27 = math.tanh %26 : vector<8x32xf32>
    %28 = vector.extract_strided_slice %13 {offsets = [0, 96], sizes = [8, 32], strides = [1, 1]} : vector<8x128xf32> to vector<8x32xf32>
    %29 = arith.negf %28 : vector<8x32xf32>
    %30 = math.exp %29 : vector<8x32xf32>
    %cst_15 = arith.constant 1.000000e+00 : f32
    %31 = vector.broadcast %cst_15 : f32 to vector<8x32xf32>
    %32 = arith.addf %31, %30 : vector<8x32xf32>
    %33 = arith.divf %31, %32 : vector<8x32xf32>
    %34 = arith.mulf %25, %12 : vector<8x32xf32>
    %35 = arith.mulf %19, %27 : vector<8x32xf32>
    %36 = arith.addf %34, %35 : vector<8x32xf32>
    %37 = math.tanh %36 : vector<8x32xf32>
    %38 = arith.mulf %33, %37 : vector<8x32xf32>
    %c0_16 = arith.constant 0 : index
    %c0_17 = arith.constant 0 : index
    %39 = vector.load %arg7[%c0_16, %c0_17] : memref<64x32xf32, #tpu.memory_space<vmem>>, vector<8x32xf32>
    tpu.vector_store %arg7[%c0_16, %c0_17], %38 {strides = array<i32>} : memref<64x32xf32, #tpu.memory_space<vmem>>, vector<8x32xf32>,
    %c8 = arith.constant 8 : index
    %c0_18 = arith.constant 0 : index
    %40 = vector.load %arg8[%c8, %c0_18] : memref<64x128xf32, #tpu.memory_space<vmem>>, vector<8x128xf32>
    %cst_19 = arith.constant dense<0.000000e+00> : vector<8x128xf32>
    %41 = tpu.matmul %38, %3, %cst_19 {dimension_numbers = #tpu.dot_dimension_numbers<[1], [0], [0], [1], [0, 0, 1, 1], [], []>} : vector<8x32xf32>, vector<32x128xf32>, vector<8x128xf32> -> vector<8x128xf32>
    %42 = arith.addf %41, %40 : vector<8x128xf32>
    %43 = vector.extract_strided_slice %42 {offsets = [0, 0], sizes = [8, 32], strides = [1, 1]} : vector<8x128xf32> to vector<8x32xf32>
    %44 = arith.negf %43 : vector<8x32xf32>
    %45 = math.exp %44 : vector<8x32xf32>
    %cst_20 = arith.constant 1.000000e+00 : f32
    %46 = vector.broadcast %cst_20 : f32 to vector<8x32xf32>
    %47 = arith.addf %46, %45 : vector<8x32xf32>
    %48 = arith.divf %46, %47 : vector<8x32xf32>
    %49 = vector.extract_strided_slice %42 {offsets = [0, 32], sizes = [8, 32], strides = [1, 1]} : vector<8x128xf32> to vector<8x32xf32>
    %50 = arith.negf %49 : vector<8x32xf32>
    %51 = math.exp %50 : vector<8x32xf32>
    %cst_21 = arith.constant 1.000000e+00 : f32
    %52 = vector.broadcast %cst_21 : f32 to vector<8x32xf32>
    %53 = arith.addf %52, %51 : vector<8x32xf32>
    %54 = arith.divf %52, %53 : vector<8x32xf32>
    %55 = vector.extract_strided_slice %42 {offsets = [0, 64], sizes = [8, 32], strides = [1, 1]} : vector<8x128xf32> to vector<8x32xf32>
    %56 = math.tanh %55 : vector<8x32xf32>
    %57 = vector.extract_strided_slice %42 {offsets = [0, 96], sizes = [8, 32], strides = [1, 1]} : vector<8x128xf32> to vector<8x32xf32>
    %58 = arith.negf %57 : vector<8x32xf32>
    %59 = math.exp %58 : vector<8x32xf32>
    %cst_22 = arith.constant 1.000000e+00 : f32
    %60 = vector.broadcast %cst_22 : f32 to vector<8x32xf32>
    %61 = arith.addf %60, %59 : vector<8x32xf32>
    %62 = arith.divf %60, %61 : vector<8x32xf32>
    %63 = arith.mulf %54, %36 : vector<8x32xf32>
    %64 = arith.mulf %48, %56 : vector<8x32xf32>
    %65 = arith.addf %63, %64 : vector<8x32xf32>
    %66 = math.tanh %65 : vector<8x32xf32>
    %67 = arith.mulf %62, %66 : vector<8x32xf32>
    %c8_23 = arith.constant 8 : index
    %c0_24 = arith.constant 0 : index
    %68 = vector.load %arg7[%c8_23, %c0_24] : memref<64x32xf32, #tpu.memory_space<vmem>>, vector<8x32xf32>
    tpu.vector_store %arg7[%c8_23, %c0_24], %67 {strides = array<i32>} : memref<64x32xf32, #tpu.memory_space<vmem>>, vector<8x32xf32>,
    %c16 = arith.constant 16 : index
    %c0_25 = arith.constant 0 : index
    %69 = vector.load %arg8[%c16, %c0_25] : memref<64x128xf32, #tpu.memory_space<vmem>>, vector<8x128xf32>
    %cst_26 = arith.constant dense<0.000000e+00> : vector<8x128xf32>
    %70 = tpu.matmul %67, %3, %cst_26 {dimension_numbers = #tpu.dot_dimension_numbers<[1], [0], [0], [1], [0, 0, 1, 1], [], []>} : vector<8x32xf32>, vector<32x128xf32>, vector<8x128xf32> -> vector<8x128xf32>
    %71 = arith.addf %70, %69 : vector<8x128xf32>
    %72 = vector.extract_strided_slice %71 {offsets = [0, 0], sizes = [8, 32], strides = [1, 1]} : vector<8x128xf32> to vector<8x32xf32>
    %73 = arith.negf %72 : vector<8x32xf32>
    %74 = math.exp %73 : vector<8x32xf32>
    %cst_27 = arith.constant 1.000000e+00 : f32
    %75 = vector.broadcast %cst_27 : f32 to vector<8x32xf32>
    %76 = arith.addf %75, %74 : vector<8x32xf32>
    %77 = arith.divf %75, %76 : vector<8x32xf32>
    %78 = vector.extract_strided_slice %71 {offsets = [0, 32], sizes = [8, 32], strides = [1, 1]} : vector<8x128xf32> to vector<8x32xf32>
    %79 = arith.negf %78 : vector<8x32xf32>
    %80 = math.exp %79 : vector<8x32xf32>
    %cst_28 = arith.constant 1.000000e+00 : f32
    %81 = vector.broadcast %cst_28 : f32 to vector<8x32xf32>
    %82 = arith.addf %81, %80 : vector<8x32xf32>
    %83 = arith.divf %81, %82 : vector<8x32xf32>
    %84 = vector.extract_strided_slice %71 {offsets = [0, 64], sizes = [8, 32], strides = [1, 1]} : vector<8x128xf32> to vector<8x32xf32>
    %85 = math.tanh %84 : vector<8x32xf32>
    %86 = vector.extract_strided_slice %71 {offsets = [0, 96], sizes = [8, 32], strides = [1, 1]} : vector<8x128xf32> to vector<8x32xf32>
    %87 = arith.negf %86 : vector<8x32xf32>
    %88 = math.exp %87 : vector<8x32xf32>
    %cst_29 = arith.constant 1.000000e+00 : f32
    %89 = vector.broadcast %cst_29 : f32 to vector<8x32xf32>
    %90 = arith.addf %89, %88 : vector<8x32xf32>
    %91 = arith.divf %89, %90 : vector<8x32xf32>
    %92 = arith.mulf %83, %65 : vector<8x32xf32>
    %93 = arith.mulf %77, %85 : vector<8x32xf32>
    %94 = arith.addf %92, %93 : vector<8x32xf32>
    %95 = math.tanh %94 : vector<8x32xf32>
    %96 = arith.mulf %91, %95 : vector<8x32xf32>
    %c16_30 = arith.constant 16 : index
    %c0_31 = arith.constant 0 : index
    %97 = vector.load %arg7[%c16_30, %c0_31] : memref<64x32xf32, #tpu.memory_space<vmem>>, vector<8x32xf32>
    tpu.vector_store %arg7[%c16_30, %c0_31], %96 {strides = array<i32>} : memref<64x32xf32, #tpu.memory_space<vmem>>, vector<8x32xf32>,
    %c24 = arith.constant 24 : index
    %c0_32 = arith.constant 0 : index
    %98 = vector.load %arg8[%c24, %c0_32] : memref<64x128xf32, #tpu.memory_space<vmem>>, vector<8x128xf32>
    %cst_33 = arith.constant dense<0.000000e+00> : vector<8x128xf32>
    %99 = tpu.matmul %96, %3, %cst_33 {dimension_numbers = #tpu.dot_dimension_numbers<[1], [0], [0], [1], [0, 0, 1, 1], [], []>} : vector<8x32xf32>, vector<32x128xf32>, vector<8x128xf32> -> vector<8x128xf32>
    %100 = arith.addf %99, %98 : vector<8x128xf32>
    %101 = vector.extract_strided_slice %100 {offsets = [0, 0], sizes = [8, 32], strides = [1, 1]} : vector<8x128xf32> to vector<8x32xf32>
    %102 = arith.negf %101 : vector<8x32xf32>
    %103 = math.exp %102 : vector<8x32xf32>
    %cst_34 = arith.constant 1.000000e+00 : f32
    %104 = vector.broadcast %cst_34 : f32 to vector<8x32xf32>
    %105 = arith.addf %104, %103 : vector<8x32xf32>
    %106 = arith.divf %104, %105 : vector<8x32xf32>
    %107 = vector.extract_strided_slice %100 {offsets = [0, 32], sizes = [8, 32], strides = [1, 1]} : vector<8x128xf32> to vector<8x32xf32>
    %108 = arith.negf %107 : vector<8x32xf32>
    %109 = math.exp %108 : vector<8x32xf32>
    %cst_35 = arith.constant 1.000000e+00 : f32
    %110 = vector.broadcast %cst_35 : f32 to vector<8x32xf32>
    %111 = arith.addf %110, %109 : vector<8x32xf32>
    %112 = arith.divf %110, %111 : vector<8x32xf32>
    %113 = vector.extract_strided_slice %100 {offsets = [0, 64], sizes = [8, 32], strides = [1, 1]} : vector<8x128xf32> to vector<8x32xf32>
    %114 = math.tanh %113 : vector<8x32xf32>
    %115 = vector.extract_strided_slice %100 {offsets = [0, 96], sizes = [8, 32], strides = [1, 1]} : vector<8x128xf32> to vector<8x32xf32>
    %116 = arith.negf %115 : vector<8x32xf32>
    %117 = math.exp %116 : vector<8x32xf32>
    %cst_36 = arith.constant 1.000000e+00 : f32
    %118 = vector.broadcast %cst_36 : f32 to vector<8x32xf32>
    %119 = arith.addf %118, %117 : vector<8x32xf32>
    %120 = arith.divf %118, %119 : vector<8x32xf32>
    %121 = arith.mulf %112, %94 : vector<8x32xf32>
    %122 = arith.mulf %106, %114 : vector<8x32xf32>
    %123 = arith.addf %121, %122 : vector<8x32xf32>
    %124 = math.tanh %123 : vector<8x32xf32>
    %125 = arith.mulf %120, %124 : vector<8x32xf32>
    %c24_37 = arith.constant 24 : index
    %c0_38 = arith.constant 0 : index
    %126 = vector.load %arg7[%c24_37, %c0_38] : memref<64x32xf32, #tpu.memory_space<vmem>>, vector<8x32xf32>
    tpu.vector_store %arg7[%c24_37, %c0_38], %125 {strides = array<i32>} : memref<64x32xf32, #tpu.memory_space<vmem>>, vector<8x32xf32>,
    %c32 = arith.constant 32 : index
    %c0_39 = arith.constant 0 : index
    %127 = vector.load %arg8[%c32, %c0_39] : memref<64x128xf32, #tpu.memory_space<vmem>>, vector<8x128xf32>
    %cst_40 = arith.constant dense<0.000000e+00> : vector<8x128xf32>
    %128 = tpu.matmul %125, %3, %cst_40 {dimension_numbers = #tpu.dot_dimension_numbers<[1], [0], [0], [1], [0, 0, 1, 1], [], []>} : vector<8x32xf32>, vector<32x128xf32>, vector<8x128xf32> -> vector<8x128xf32>
    %129 = arith.addf %128, %127 : vector<8x128xf32>
    %130 = vector.extract_strided_slice %129 {offsets = [0, 0], sizes = [8, 32], strides = [1, 1]} : vector<8x128xf32> to vector<8x32xf32>
    %131 = arith.negf %130 : vector<8x32xf32>
    %132 = math.exp %131 : vector<8x32xf32>
    %cst_41 = arith.constant 1.000000e+00 : f32
    %133 = vector.broadcast %cst_41 : f32 to vector<8x32xf32>
    %134 = arith.addf %133, %132 : vector<8x32xf32>
    %135 = arith.divf %133, %134 : vector<8x32xf32>
    %136 = vector.extract_strided_slice %129 {offsets = [0, 32], sizes = [8, 32], strides = [1, 1]} : vector<8x128xf32> to vector<8x32xf32>
    %137 = arith.negf %136 : vector<8x32xf32>
    %138 = math.exp %137 : vector<8x32xf32>
    %cst_42 = arith.constant 1.000000e+00 : f32
    %139 = vector.broadcast %cst_42 : f32 to vector<8x32xf32>
    %140 = arith.addf %139, %138 : vector<8x32xf32>
    %141 = arith.divf %139, %140 : vector<8x32xf32>
    %142 = vector.extract_strided_slice %129 {offsets = [0, 64], sizes = [8, 32], strides = [1, 1]} : vector<8x128xf32> to vector<8x32xf32>
    %143 = math.tanh %142 : vector<8x32xf32>
    %144 = vector.extract_strided_slice %129 {offsets = [0, 96], sizes = [8, 32], strides = [1, 1]} : vector<8x128xf32> to vector<8x32xf32>
    %145 = arith.negf %144 : vector<8x32xf32>
    %146 = math.exp %145 : vector<8x32xf32>
    %cst_43 = arith.constant 1.000000e+00 : f32
    %147 = vector.broadcast %cst_43 : f32 to vector<8x32xf32>
    %148 = arith.addf %147, %146 : vector<8x32xf32>
    %149 = arith.divf %147, %148 : vector<8x32xf32>
    %150 = arith.mulf %141, %123 : vector<8x32xf32>
    %151 = arith.mulf %135, %143 : vector<8x32xf32>
    %152 = arith.addf %150, %151 : vector<8x32xf32>
    %153 = math.tanh %152 : vector<8x32xf32>
    %154 = arith.mulf %149, %153 : vector<8x32xf32>
    %c32_44 = arith.constant 32 : index
    %c0_45 = arith.constant 0 : index
    %155 = vector.load %arg7[%c32_44, %c0_45] : memref<64x32xf32, #tpu.memory_space<vmem>>, vector<8x32xf32>
    tpu.vector_store %arg7[%c32_44, %c0_45], %154 {strides = array<i32>} : memref<64x32xf32, #tpu.memory_space<vmem>>, vector<8x32xf32>,
    %c40 = arith.constant 40 : index
    %c0_46 = arith.constant 0 : index
    %156 = vector.load %arg8[%c40, %c0_46] : memref<64x128xf32, #tpu.memory_space<vmem>>, vector<8x128xf32>
    %cst_47 = arith.constant dense<0.000000e+00> : vector<8x128xf32>
    %157 = tpu.matmul %154, %3, %cst_47 {dimension_numbers = #tpu.dot_dimension_numbers<[1], [0], [0], [1], [0, 0, 1, 1], [], []>} : vector<8x32xf32>, vector<32x128xf32>, vector<8x128xf32> -> vector<8x128xf32>
    %158 = arith.addf %157, %156 : vector<8x128xf32>
    %159 = vector.extract_strided_slice %158 {offsets = [0, 0], sizes = [8, 32], strides = [1, 1]} : vector<8x128xf32> to vector<8x32xf32>
    %160 = arith.negf %159 : vector<8x32xf32>
    %161 = math.exp %160 : vector<8x32xf32>
    %cst_48 = arith.constant 1.000000e+00 : f32
    %162 = vector.broadcast %cst_48 : f32 to vector<8x32xf32>
    %163 = arith.addf %162, %161 : vector<8x32xf32>
    %164 = arith.divf %162, %163 : vector<8x32xf32>
    %165 = vector.extract_strided_slice %158 {offsets = [0, 32], sizes = [8, 32], strides = [1, 1]} : vector<8x128xf32> to vector<8x32xf32>
    %166 = arith.negf %165 : vector<8x32xf32>
    %167 = math.exp %166 : vector<8x32xf32>
    %cst_49 = arith.constant 1.000000e+00 : f32
    %168 = vector.broadcast %cst_49 : f32 to vector<8x32xf32>
    %169 = arith.addf %168, %167 : vector<8x32xf32>
    %170 = arith.divf %168, %169 : vector<8x32xf32>
    %171 = vector.extract_strided_slice %158 {offsets = [0, 64], sizes = [8, 32], strides = [1, 1]} : vector<8x128xf32> to vector<8x32xf32>
    %172 = math.tanh %171 : vector<8x32xf32>
    %173 = vector.extract_strided_slice %158 {offsets = [0, 96], sizes = [8, 32], strides = [1, 1]} : vector<8x128xf32> to vector<8x32xf32>
    %174 = arith.negf %173 : vector<8x32xf32>
    %175 = math.exp %174 : vector<8x32xf32>
    %cst_50 = arith.constant 1.000000e+00 : f32
    %176 = vector.broadcast %cst_50 : f32 to vector<8x32xf32>
    %177 = arith.addf %176, %175 : vector<8x32xf32>
    %178 = arith.divf %176, %177 : vector<8x32xf32>
    %179 = arith.mulf %170, %152 : vector<8x32xf32>
    %180 = arith.mulf %164, %172 : vector<8x32xf32>
    %181 = arith.addf %179, %180 : vector<8x32xf32>
    %182 = math.tanh %181 : vector<8x32xf32>
    %183 = arith.mulf %178, %182 : vector<8x32xf32>
    %c40_51 = arith.constant 40 : index
    %c0_52 = arith.constant 0 : index
    %184 = vector.load %arg7[%c40_51, %c0_52] : memref<64x32xf32, #tpu.memory_space<vmem>>, vector<8x32xf32>
    tpu.vector_store %arg7[%c40_51, %c0_52], %183 {strides = array<i32>} : memref<64x32xf32, #tpu.memory_space<vmem>>, vector<8x32xf32>,
    %c48 = arith.constant 48 : index
    %c0_53 = arith.constant 0 : index
    %185 = vector.load %arg8[%c48, %c0_53] : memref<64x128xf32, #tpu.memory_space<vmem>>, vector<8x128xf32>
    %cst_54 = arith.constant dense<0.000000e+00> : vector<8x128xf32>
    %186 = tpu.matmul %183, %3, %cst_54 {dimension_numbers = #tpu.dot_dimension_numbers<[1], [0], [0], [1], [0, 0, 1, 1], [], []>} : vector<8x32xf32>, vector<32x128xf32>, vector<8x128xf32> -> vector<8x128xf32>
    %187 = arith.addf %186, %185 : vector<8x128xf32>
    %188 = vector.extract_strided_slice %187 {offsets = [0, 0], sizes = [8, 32], strides = [1, 1]} : vector<8x128xf32> to vector<8x32xf32>
    %189 = arith.negf %188 : vector<8x32xf32>
    %190 = math.exp %189 : vector<8x32xf32>
    %cst_55 = arith.constant 1.000000e+00 : f32
    %191 = vector.broadcast %cst_55 : f32 to vector<8x32xf32>
    %192 = arith.addf %191, %190 : vector<8x32xf32>
    %193 = arith.divf %191, %192 : vector<8x32xf32>
    %194 = vector.extract_strided_slice %187 {offsets = [0, 32], sizes = [8, 32], strides = [1, 1]} : vector<8x128xf32> to vector<8x32xf32>
    %195 = arith.negf %194 : vector<8x32xf32>
    %196 = math.exp %195 : vector<8x32xf32>
    %cst_56 = arith.constant 1.000000e+00 : f32
    %197 = vector.broadcast %cst_56 : f32 to vector<8x32xf32>
    %198 = arith.addf %197, %196 : vector<8x32xf32>
    %199 = arith.divf %197, %198 : vector<8x32xf32>
    %200 = vector.extract_strided_slice %187 {offsets = [0, 64], sizes = [8, 32], strides = [1, 1]} : vector<8x128xf32> to vector<8x32xf32>
    %201 = math.tanh %200 : vector<8x32xf32>
    %202 = vector.extract_strided_slice %187 {offsets = [0, 96], sizes = [8, 32], strides = [1, 1]} : vector<8x128xf32> to vector<8x32xf32>
    %203 = arith.negf %202 : vector<8x32xf32>
    %204 = math.exp %203 : vector<8x32xf32>
    %cst_57 = arith.constant 1.000000e+00 : f32
    %205 = vector.broadcast %cst_57 : f32 to vector<8x32xf32>
    %206 = arith.addf %205, %204 : vector<8x32xf32>
    %207 = arith.divf %205, %206 : vector<8x32xf32>
    %208 = arith.mulf %199, %181 : vector<8x32xf32>
    %209 = arith.mulf %193, %201 : vector<8x32xf32>
    %210 = arith.addf %208, %209 : vector<8x32xf32>
    %211 = math.tanh %210 : vector<8x32xf32>
    %212 = arith.mulf %207, %211 : vector<8x32xf32>
    %c48_58 = arith.constant 48 : index
    %c0_59 = arith.constant 0 : index
    %213 = vector.load %arg7[%c48_58, %c0_59] : memref<64x32xf32, #tpu.memory_space<vmem>>, vector<8x32xf32>
    tpu.vector_store %arg7[%c48_58, %c0_59], %212 {strides = array<i32>} : memref<64x32xf32, #tpu.memory_space<vmem>>, vector<8x32xf32>,
    %c56 = arith.constant 56 : index
    %c0_60 = arith.constant 0 : index
    %214 = vector.load %arg8[%c56, %c0_60] : memref<64x128xf32, #tpu.memory_space<vmem>>, vector<8x128xf32>
    %cst_61 = arith.constant dense<0.000000e+00> : vector<8x128xf32>
    %215 = tpu.matmul %212, %3, %cst_61 {dimension_numbers = #tpu.dot_dimension_numbers<[1], [0], [0], [1], [0, 0, 1, 1], [], []>} : vector<8x32xf32>, vector<32x128xf32>, vector<8x128xf32> -> vector<8x128xf32>
    %216 = arith.addf %215, %214 : vector<8x128xf32>
    %217 = vector.extract_strided_slice %216 {offsets = [0, 0], sizes = [8, 32], strides = [1, 1]} : vector<8x128xf32> to vector<8x32xf32>
    %218 = arith.negf %217 : vector<8x32xf32>
    %219 = math.exp %218 : vector<8x32xf32>
    %cst_62 = arith.constant 1.000000e+00 : f32
    %220 = vector.broadcast %cst_62 : f32 to vector<8x32xf32>
    %221 = arith.addf %220, %219 : vector<8x32xf32>
    %222 = arith.divf %220, %221 : vector<8x32xf32>
    %223 = vector.extract_strided_slice %216 {offsets = [0, 32], sizes = [8, 32], strides = [1, 1]} : vector<8x128xf32> to vector<8x32xf32>
    %224 = arith.negf %223 : vector<8x32xf32>
    %225 = math.exp %224 : vector<8x32xf32>
    %cst_63 = arith.constant 1.000000e+00 : f32
    %226 = vector.broadcast %cst_63 : f32 to vector<8x32xf32>
    %227 = arith.addf %226, %225 : vector<8x32xf32>
    %228 = arith.divf %226, %227 : vector<8x32xf32>
    %229 = vector.extract_strided_slice %216 {offsets = [0, 64], sizes = [8, 32], strides = [1, 1]} : vector<8x128xf32> to vector<8x32xf32>
    %230 = math.tanh %229 : vector<8x32xf32>
    %231 = vector.extract_strided_slice %216 {offsets = [0, 96], sizes = [8, 32], strides = [1, 1]} : vector<8x128xf32> to vector<8x32xf32>
    %232 = arith.negf %231 : vector<8x32xf32>
    %233 = math.exp %232 : vector<8x32xf32>
    %cst_64 = arith.constant 1.000000e+00 : f32
    %234 = vector.broadcast %cst_64 : f32 to vector<8x32xf32>
    %235 = arith.addf %234, %233 : vector<8x32xf32>
    %236 = arith.divf %234, %235 : vector<8x32xf32>
    %237 = arith.mulf %228, %210 : vector<8x32xf32>
    %238 = arith.mulf %222, %230 : vector<8x32xf32>
    %239 = arith.addf %237, %238 : vector<8x32xf32>
    %240 = math.tanh %239 : vector<8x32xf32>
    %241 = arith.mulf %236, %240 : vector<8x32xf32>
    %c56_65 = arith.constant 56 : index
    %c0_66 = arith.constant 0 : index
    %242 = vector.load %arg7[%c56_65, %c0_66] : memref<64x32xf32, #tpu.memory_space<vmem>>, vector<8x32xf32>
    tpu.vector_store %arg7[%c56_65, %c0_66], %241 {strides = array<i32>} : memref<64x32xf32, #tpu.memory_space<vmem>>, vector<8x32xf32>,
    %c0_67 = arith.constant 0 : index
    %c0_68 = arith.constant 0 : index
    %c0_69 = arith.constant 0 : index
    %243 = vector.load %arg5[%c0_67, %c0_68, %c0_69] : memref<1x8x32xf32, #tpu.memory_space<vmem>>, vector<1x8x32xf32>
    %244 = vector.shape_cast %243 : vector<1x8x32xf32> to vector<8x32xf32>
    %245 = vector.shape_cast %241 : vector<8x32xf32> to vector<1x8x32xf32>
    tpu.vector_store %arg5[%c0_67, %c0_68, %c0_69], %245 {strides = array<i32>} : memref<1x8x32xf32, #tpu.memory_space<vmem>>, vector<1x8x32xf32>,
    %c0_70 = arith.constant 0 : index
    %c0_71 = arith.constant 0 : index
    %c0_72 = arith.constant 0 : index
    %246 = vector.load %arg6[%c0_70, %c0_71, %c0_72] : memref<1x8x32xf32, #tpu.memory_space<vmem>>, vector<1x8x32xf32>
    %247 = vector.shape_cast %246 : vector<1x8x32xf32> to vector<8x32xf32>
    %248 = vector.shape_cast %239 : vector<8x32xf32> to vector<1x8x32xf32>
    tpu.vector_store %arg6[%c0_70, %c0_71, %c0_72], %248 {strides = array<i32>} : memref<1x8x32xf32, #tpu.memory_space<vmem>>, vector<1x8x32xf32>,
    return
  }
  func.func @transform_0(%arg0: i32) -> (i32, i32) {
    %c0_i32 = arith.constant 0 : i32
    %c0_i32_0 = arith.constant 0 : i32
    %c0_i32_1 = arith.constant 0 : i32
    return %c0_i32, %c0_i32_0 : i32, i32
  }
  func.func @transform_1(%arg0: i32) -> (i32, i32, i32) {
    %c0_i32 = arith.constant 0 : i32
    %c0_i32_0 = arith.constant 0 : i32
    %c0_i32_1 = arith.constant 0 : i32
    return %arg0, %c0_i32, %c0_i32_0 : i32, i32, i32
  }
  func.func @transform_2(%arg0: i32) -> (i32, i32, i32) {
    %c0_i32 = arith.constant 0 : i32
    %c0_i32_0 = arith.constant 0 : i32
    %c0_i32_1 = arith.constant 0 : i32
    return %arg0, %c0_i32, %c0_i32_0 : i32, i32, i32
  }
  func.func @transform_3(%arg0: i32) -> (i32, i32, i32) {
    %c0_i32 = arith.constant 0 : i32
    %c0_i32_0 = arith.constant 0 : i32
    %c0_i32_1 = arith.constant 0 : i32
    return %arg0, %c0_i32, %c0_i32_0 : i32, i32, i32
  }
  func.func @transform_4(%arg0: i32) -> (i32, i32, i32) {
    %c0_i32 = arith.constant 0 : i32
    %c0_i32_0 = arith.constant 0 : i32
    %c0_i32_1 = arith.constant 0 : i32
    return %arg0, %c0_i32, %c0_i32_0 : i32, i32, i32
  }
  func.func @transform_5(%arg0: i32) -> (i32, i32, i32) {
    %c0_i32 = arith.constant 0 : i32
    %c0_i32_0 = arith.constant 0 : i32
    %c0_i32_1 = arith.constant 0 : i32
    return %arg0, %c0_i32, %c0_i32_0 : i32, i32, i32
  }
}

</mosaic_0001>

<llo_original>
// kernel: encoder_forward.1
$region0: #{encoder_forward.1}
  #allocation0 [shape = 'u32[]', space=smem, size = 0x4, offset = 0x4, fixed_abs, tag = 'smem constant byte address 0x4 - core index']
  #allocation1 [shape = 'u32[144,128]{1,0:T(1,128)}', space=vmem, size = 0x12000, scoped, tag = 'internal scratch']
  #allocation2 [shape = 'f32[64,32]{1,0:T(8,128)}', space=vmem, size = 0x8000, scoped, tag = 'scratch operand']
  #allocation3 [shape = 'f32[64,128]{1,0:T(8,128)}', space=vmem, size = 0x8000, scoped, tag = 'scratch operand']
  %s0 = inlined_call_operand.vmem [shape: f32[64,32], index: 0, kind: input, shape index: {}]
  %s1 = inlined_call_operand.vmem [shape: f32[2,32,128], index: 1, kind: input, shape index: {}]
  %s2 = inlined_call_operand.hbm [shape: f32[2,32,128], index: 2, kind: input, shape index: {}]
  %s3 = inlined_call_operand.vmem [shape: f32[2,1,128], index: 3, kind: input, shape index: {}]
  %s4 = inlined_call_operand.vmem [shape: f32[2,8,32], index: 4, kind: output, shape index: {0}]
  %s5 = inlined_call_operand.vmem [shape: f32[2,8,32], index: 5, kind: output, shape index: {1}]
  %6 = xla_tuple %s4, %s5
  %s7 = sld [smem:[#allocation0]]
  $region69: #{encoder_forward.1} parent=0
    _
  %s9 = ssub.s32 1, %s7
  %s10 = scalar_select 0, %s9, %s7
  $region1: #{encoder_forward.1} parent=0
    #allocation4 [shape = 'u8[32768]{0}', space=vmem, size = 0x8000, scoped, tag = 'input window, operand 2']
    #allocation5 [shape = 's32[2]{0}', space=sflag, size = 0x8, scoped, tag = 'scoped memory for encoder_forward.1']
    %11 = vsyncpa [#allocation5], 0
    %s12 = scalar_lea.sflag [#allocation5], 1
    %13 = vsyncpa %s12, 0
    loop: start=0, step=1, limit=4
    $region2: #{encoder_forward.1} parent=1 // loop_pre_header
      _
    $region3: #{encoder_forward.1} parent=1 // loop_header
      %s15 = sphi 0, %s19
      %p16 = scmp.ge.s32.totalorder %s15, 4
      %s23 = sphi 0, %s23
      %s25 = sphi 0, %s23
      %s26 = sphi 0, %s25
      %s40 = sphi 0, %s26
      %s46 = sphi 0, %s48
      %s49 = sphi 0, %s46
      %s50 = sphi 0, %s49
      %s66 = sphi 0, %s50
      %s72 = sphi 0, %s74
      %s75 = sphi 0, %s72
      %s76 = sphi 0, %s75
      %s92 = sphi 0, %s76
      %s98 = sphi 0, %s100
      %s101 = sphi 0, %s98
      %s102 = sphi 0, %s101
      %s118 = sphi 0, %s102
      %s124 = sphi 0, %s126
      %s127 = sphi 0, %s124
      %s128 = sphi 0, %s127
      %s144 = sphi 0, %s128
      %s150 = sphi 0, %s152
      %s153 = sphi 0, %s150
      %s154 = sphi 0, %s153
      %s170 = sphi 0, %s154
    $region4: #{encoder_forward.1} parent=1 // loop_header_branch
      %18 = sbr.rel (%p16) target = $region8
    $region5: #{encoder_forward.1} parent=1 // loop_body
      %s20 = ssub.s32 %s15, 1
      %s21 = ssub.s32 %s15, 2
      %s22 = sadd.s32 %s15, 1
      %s24 = sadd.s32 %s23, 1
      %p27 = scmp.eq.s32.totalorder %s15, 1
      %p28 = scmp.ne.s32.totalorder %s23, %s25
      %p29 = scmp.eq.s32.totalorder %s15, 0
      %p30 = por %p28, %p29
      %p31 = scmp.ne.s32.totalorder %s23, %s25
      %p32 = scmp.eq.s32.totalorder %s20, 1
      %p33 = por %p31, %p32
      %p34 = scmp.ne.s32.totalorder %s25, %s26
      %p35 = scmp.eq.s32.totalorder %s20, 0
      %p36 = por %p34, %p35
      %p37 = scmp.ne.s32.totalorder %s25, %s26
      %p38 = scmp.eq.s32.totalorder %s21, 1
      %p39 = por %p37, %p38
      %p41 = scmp.ne.s32.totalorder %s26, %s40
      %p42 = scmp.eq.s32.totalorder %s21, 0
      %p43 = por %p41, %p42
      %s44 = ssub.s32 %s15, %s22
      %p45 = scmp.eq.s32.totalorder %s44, 0
      %s47 = sadd.s32 %s46, 1
      %s48 = scalar_select %p45, %s46, %s47
      %p51 = pneg %p45
      %p52 = scmp.eq.s32.totalorder %s15, 1
      %p53 = por %p51, %p52
      %p54 = scmp.ne.s32.totalorder %s46, %s49
      %p55 = scmp.eq.s32.totalorder %s15, 0
      %p56 = por %p54, %p55
      %p57 = scmp.ne.s32.totalorder %s46, %s49
      %p58 = scmp.eq.s32.totalorder %s20, 1
      %p59 = por %p57, %p58
      %p60 = scmp.ne.s32.totalorder %s49, %s50
      %p61 = scmp.eq.s32.totalorder %s20, 0
      %p62 = por %p60, %p61
      %p63 = scmp.ne.s32.totalorder %s49, %s50
      %p64 = scmp.eq.s32.totalorder %s21, 1
      %p65 = por %p63, %p64
      %p67 = scmp.ne.s32.totalorder %s50, %s66
      %p68 = scmp.eq.s32.totalorder %s21, 0
      %p69 = por %p67, %p68
      %s70 = ssub.s32 %s15, %s22
      %p71 = scmp.eq.s32.totalorder %s70, 0
      %s73 = sadd.s32 %s72, 1
      %s74 = scalar_select %p71, %s72, %s73
      %p77 = pneg %p71
      %p78 = scmp.eq.s32.totalorder %s15, 1
      %p79 = por %p77, %p78
      %p80 = scmp.ne.s32.totalorder %s72, %s75
      %p81 = scmp.eq.s32.totalorder %s15, 0
      %p82 = por %p80, %p81
      %p83 = scmp.ne.s32.totalorder %s72, %s75
      %p84 = scmp.eq.s32.totalorder %s20, 1
      %p85 = por %p83, %p84
      %p86 = scmp.ne.s32.totalorder %s75, %s76
      %p87 = scmp.eq.s32.totalorder %s20, 0
      %p88 = por %p86, %p87
      %p89 = scmp.ne.s32.totalorder %s75, %s76
      %p90 = scmp.eq.s32.totalorder %s21, 1
      %p91 = por %p89, %p90
      %p93 = scmp.ne.s32.totalorder %s76, %s92
      %p94 = scmp.eq.s32.totalorder %s21, 0
      %p95 = por %p93, %p94
      %s96 = ssub.s32 %s15, %s22
      %p97 = scmp.eq.s32.totalorder %s96, 0
      %s99 = sadd.s32 %s98, 1
      %s100 = scalar_select %p97, %s98, %s99
      %p103 = pneg %p97
      %p104 = scmp.eq.s32.totalorder %s15, 1
      %p105 = por %p103, %p104
      %p106 = scmp.ne.s32.totalorder %s98, %s101
      %p107 = scmp.eq.s32.totalorder %s15, 0
      %p108 = por %p106, %p107
      %p109 = scmp.ne.s32.totalorder %s98, %s101
      %p110 = scmp.eq.s32.totalorder %s20, 1
      %p111 = por %p109, %p110
      %p112 = scmp.ne.s32.totalorder %s101, %s102
      %p113 = scmp.eq.s32.totalorder %s20, 0
      %p114 = por %p112, %p113
      %p115 = scmp.ne.s32.totalorder %s101, %s102
      %p116 = scmp.eq.s32.totalorder %s21, 1
      %p117 = por %p115, %p116
      %p119 = scmp.ne.s32.totalorder %s102, %s118
      %p120 = scmp.eq.s32.totalorder %s21, 0
      %p121 = por %p119, %p120
      %s122 = ssub.s32 %s15, %s22
      %p123 = scmp.eq.s32.totalorder %s122, 0
      %s125 = sadd.s32 %s124, 1
      %s126 = scalar_select %p123, %s124, %s125
      %p129 = pneg %p123
      %p130 = scmp.eq.s32.totalorder %s15, 1
      %p131 = por %p129, %p130
      %p132 = scmp.ne.s32.totalorder %s124, %s127
      %p133 = scmp.eq.s32.totalorder %s15, 0
      %p134 = por %p132, %p133
      %p135 = scmp.ne.s32.totalorder %s124, %s127
      %p136 = scmp.eq.s32.totalorder %s20, 1
      %p137 = por %p135, %p136
      %p138 = scmp.ne.s32.totalorder %s127, %s128
      %p139 = scmp.eq.s32.totalorder %s20, 0
      %p140 = por %p138, %p139
      %p141 = scmp.ne.s32.totalorder %s127, %s128
      %p142 = scmp.eq.s32.totalorder %s21, 1
      %p143 = por %p141, %p142
      %p145 = scmp.ne.s32.totalorder %s128, %s144
      %p146 = scmp.eq.s32.totalorder %s21, 0
      %p147 = por %p145, %p146
      %s148 = ssub.s32 %s15, %s22
      %p149 = scmp.eq.s32.totalorder %s148, 0
      %s151 = sadd.s32 %s150, 1
      %s152 = scalar_select %p149, %s150, %s151
      %p155 = pneg %p149
      %p156 = scmp.eq.s32.totalorder %s15, 1
      %p157 = por %p155, %p156
      %p158 = scmp.ne.s32.totalorder %s150, %s153
      %p159 = scmp.eq.s32.totalorder %s15, 0
      %p160 = por %p158, %p159
      %p161 = scmp.ne.s32.totalorder %s150, %s153
      %p162 = scmp.eq.s32.totalorder %s20, 1
      %p163 = por %p161, %p162
      %p164 = scmp.ne.s32.totalorder %s153, %s154
      %p165 = scmp.eq.s32.totalorder %s20, 0
      %p166 = por %p164, %p165
      %p167 = scmp.ne.s32.totalorder %s153, %s154
      %p168 = scmp.eq.s32.totalorder %s21, 1
      %p169 = por %p167, %p168
      %p171 = scmp.ne.s32.totalorder %s154, %s170
      %p172 = scmp.eq.s32.totalorder %s21, 0
      %p173 = por %p171, %p172
      %p174 = scmp.le.s32.totalorder 1, %s15
      %p175 = scmp.lt.s32.totalorder %s15, 3
      %p176 = pnand %p174, %p175
      %p177 = pneg %p176
      // Predicated region
      $region9: #{encoder_forward.1} parent=5 // pred_check
        _
      $region10: #{encoder_forward.1} parent=5 // pred_check_branch
        %179 = sbr.rel (%p176) target = $region12
      $region11: #{encoder_forward.1} parent=5 // pred_region
        %s180 = ssub.s32 %s15, 1
        // Predicated region
        $region13: #{encoder_forward.1} parent=11 // pred_check
          %p181 = pneg %p36
        $region14: #{encoder_forward.1} parent=11 // pred_check_branch
          %183 = sbr.rel (%p181) target = $region16
        $region15: #{encoder_forward.1} parent=11 // pred_region
          _
        $region16: #{encoder_forward.1} parent=11 // pred_fallthru
          _
      $region12: #{encoder_forward.1} parent=5 // pred_fallthru
        _
      %p184 = scmp.lt.s32.totalorder %s15, 2
      // Predicated region
      $region17: #{encoder_forward.1} parent=5 // pred_check
        %p185 = pneg %p184
      $region18: #{encoder_forward.1} parent=5 // pred_check_branch
        %187 = sbr.rel (%p185) target = $region20
      $region19: #{encoder_forward.1} parent=5 // pred_region
        // Predicated region
        $region21: #{encoder_forward.1} parent=19 // pred_check
          %p188 = pneg %p56
        $region22: #{encoder_forward.1} parent=19 // pred_check_branch
          %190 = sbr.rel (%p188) target = $region24
        $region23: #{encoder_forward.1} parent=19 // pred_region
          %p191 = scmp.lt.s32.totalorder %s15, 1
          %s192 = scalar_select %p191, %s15, 1
          %s193 = smul.addr %s192, 4
          %s194 = smul.addr %s193, 8
          %s195 = scalar_lea.vmem %s1, %s194
        $region24: #{encoder_forward.1} parent=19 // pred_fallthru
          _
        // Predicated region
        $region25: #{encoder_forward.1} parent=19 // pred_check
          %p196 = pneg %p82
        $region26: #{encoder_forward.1} parent=19 // pred_check_branch
          %198 = sbr.rel (%p196) target = $region28
        $region27: #{encoder_forward.1} parent=19 // pred_region
          %s199 = sand.u32 %s72, 1
          %s200 = scalar_lea.sflag [#allocation5], %s199
          %s201 = sand.u32 %s72, 1
          %s202 = smul.addr %s201, 32
          %s203 = scalar_lea.vmem [#allocation4], %s202
          %s205 = ssub.s32 512, 512
          %206 = vsyncadd %s200, %s205
          %s207 = smul.addr %s15, 4
          %s208 = smul.addr %s207, 128
          %s209 = scalar_lea.hbm %s2, %s208
          %s210 = sshll.u32 %s203, 4
          %s211 = int_to_ptr.vmem [resolvable:$true] %s210
          %216 = dma.hbm_to_vmem [thread:$0]  %s209, 512, %s211, %s200, 128, 128, 8
        $region28: #{encoder_forward.1} parent=19 // pred_fallthru
          _
        // Predicated region
        $region29: #{encoder_forward.1} parent=19 // pred_check
          %p217 = pneg %p108
        $region30: #{encoder_forward.1} parent=19 // pred_check_branch
          %219 = sbr.rel (%p217) target = $region32
        $region31: #{encoder_forward.1} parent=19 // pred_region
          %p220 = scmp.lt.s32.totalorder %s15, 1
          %s221 = scalar_select %p220, %s15, 1
          %s222 = scalar_lea.vmem %s3, %s221
        $region32: #{encoder_forward.1} parent=19 // pred_fallthru
          _
      $region20: #{encoder_forward.1} parent=5 // pred_fallthru
        _
      %p223 = scmp.le.s32.totalorder 1, %s15
      %p224 = scmp.lt.s32.totalorder %s15, 3
      %p225 = pnand %p223, %p224
      %p226 = pneg %p225
      // Predicated region
      $region33: #{encoder_forward.1} parent=5 // pred_check
        _
      $region34: #{encoder_forward.1} parent=5 // pred_check_branch
        %228 = sbr.rel (%p225) target = $region36
      $region35: #{encoder_forward.1} parent=5 // pred_region
        %s229 = ssub.s32 %s15, 1
        %s230 = sand.u32 %s75, 1
        %s231 = scalar_lea.sflag [#allocation5], %s230
        %s232 = sand.u32 %s75, 1
        %s233 = smul.addr %s232, 32
        %s234 = scalar_lea.vmem [#allocation4], %s233
        // Predicated region
        $region37: #{encoder_forward.1} parent=35 // pred_check
          %p235 = pneg %p88
        $region38: #{encoder_forward.1} parent=35 // pred_check_branch
          %237 = sbr.rel (%p235) target = $region40
        $region39: #{encoder_forward.1} parent=35 // pred_region
          %238 = dma.done %s231, 512
        $region40: #{encoder_forward.1} parent=35 // pred_fallthru
          _
        %p239 = pneg %p36
        %p240 = pneg %p33
        %p241 = scmp.lt.s32.totalorder %s20, 1
        %s242 = scalar_select %p241, %s20, 1
        %s243 = smul.addr %s242, 4
        %s244 = smul.addr %s243, 8
        %s245 = scalar_lea.vmem %s1, %s244
        %p246 = pneg %p62
        %p247 = pneg %p59
        %s248 = sand.u32 %s75, 1
        %s249 = scalar_lea.sflag [#allocation5], %s248
        %s250 = sand.u32 %s75, 1
        %s251 = smul.addr %s250, 32
        %s252 = scalar_lea.vmem [#allocation4], %s251
        %p253 = pneg %p88
        %p254 = pneg %p85
        %p255 = scmp.lt.s32.totalorder %s20, 1
        %s256 = scalar_select %p255, %s20, 1
        %s257 = scalar_lea.vmem %s3, %s256
        %p258 = pneg %p114
        %p259 = pneg %p111
        %p260 = pneg %p140
        %p261 = pneg %p137
        %p262 = scmp.lt.s32.totalorder %s20, 1
        %s263 = scalar_select %p262, %s20, 1
        %s264 = smul.addr %s263, 8
        %s265 = scalar_lea.vmem %s4, %s264
        %p266 = pneg %p166
        %p267 = pneg %p163
        %p268 = scmp.lt.s32.totalorder %s20, 1
        %s269 = scalar_select %p268, %s20, 1
        %s270 = smul.addr %s269, 8
        %s271 = scalar_lea.vmem %s5, %s270
        %p272 = scmp.lt.s32.totalorder %s20, 1
        %s273 = scalar_select %p272, %s20, 1
        %s274 = smul.addr %s273, 4
        %s275 = smul.addr %s274, 8
        %s276 = scalar_lea.vmem %s1, %s275
        %p277 = scmp.lt.s32.totalorder %s20, 1
        %s278 = scalar_select %p277, %s20, 1
        %s279 = scalar_lea.vmem %s3, %s278
        %p280 = scmp.lt.s32.totalorder %s20, 1
        %s281 = scalar_select %p280, %s20, 1
        %s282 = smul.addr %s281, 8
        %s283 = scalar_lea.vmem %s4, %s282
        %p284 = scmp.lt.s32.totalorder %s20, 1
        %s285 = scalar_select %p284, %s20, 1
        %s286 = smul.addr %s285, 8
        %s287 = scalar_lea.vmem %s5, %s286
        %v288 = vld [vmem:[%s276] sm:$0xff]
        %v289 = vld [vmem:[%s276 + $0x8] sm:$0xff]
        %v290 = vld [vmem:[%s276 + $0x10] sm:$0xff]
        %v291 = vld [vmem:[%s276 + $0x18] sm:$0xff]
        %v292 = vld [vmem:[%s234] sm:$0xff]
        %v293 = vld [vmem:[%s234 + $0x8] sm:$0xff]
        %v294 = vld [vmem:[%s234 + $0x10] sm:$0xff]
        %v295 = vld [vmem:[%s234 + $0x18] sm:$0xff]
        %v296 = vld [vmem:[%s279] sm:$0x1]
        %p297 = scmp.eq.s32.totalorder %s20, 0
        // Predicated region
        $region41: #{encoder_forward.1} parent=35 // pred_check
          %p298 = pneg %p297
        $region42: #{encoder_forward.1} parent=35 // pred_check_branch
          %300 = sbr.rel (%p298) target = $region44
        $region43: #{encoder_forward.1} parent=35 // pred_region
          %v301 = vld [vmem:[%s0] sm:$0xff]
          %v302 = vld [vmem:[%s0 + $0x8] sm:$0xff]
          %v303 = vld [vmem:[%s0 + $0x10] sm:$0xff]
          %v304 = vld [vmem:[%s0 + $0x18] sm:$0xff]
          %v305 = vld [vmem:[%s0 + $0x20] sm:$0xff]
          %v306 = vld [vmem:[%s0 + $0x28] sm:$0xff]
          %v307 = vld [vmem:[%s0 + $0x30] sm:$0xff]
          %v308 = vld [vmem:[%s0 + $0x38] sm:$0xff]
          %v310 = vlaneseq
          %v311 = vshrl.u32 %v310, 7
          %v312 = vsub.s32 0, %v311
          %v313 = vrot.slane %v296, %v312
          %vm315 = vcmask 261120
          %v317 = vsel %vm315, %v301, 0
          %v320 = vsel %vm315, %v302, 0
          %v323 = vsel %vm315, %v303, 0
          %v326 = vsel %vm315, %v304, 0
          %v329 = vsel %vm315, %v305, 0
          %v332 = vsel %vm315, %v306, 0
          %v335 = vsel %vm315, %v307, 0
          %v338 = vsel %vm315, %v308, 0
          %340 = vmatprep.subr.mxu0 0.0
          %341 = vmatpush1.msra.mxu0 0.0
          %342 = vmatprep.subr.mxu0 0.0
          %343 = vmatpush1.msra.mxu0 0.0
          %344 = vmatprep.subr.mxu0 0.0
          %345 = vmatpush1.msra.mxu0 0.0
          %346 = vmatprep.subr.mxu0 0.0
          %347 = vmatpush1.msra.mxu0 0.0
          %348 = vmatprep.subr.mxu0 0.0
          %349 = vmatpush1.msra.mxu0 0.0
          %350 = vmatprep.subr.mxu0 0.0
          %351 = vmatpush1.msra.mxu0 0.0
          %352 = vmatprep.subr.mxu0 0.0
          %353 = vmatpush1.msra.mxu0 0.0
          %354 = vmatprep.subr.mxu0 0.0
          %355 = vmatpush1.msra.mxu0 0.0
          %356 = vmatprep.subr.mxu0 0.0
          %357 = vmatpush1.msra.mxu0 0.0
          %358 = vmatprep.subr.mxu0 0.0
          %359 = vmatpush1.msra.mxu0 0.0
          %360 = vmatprep.subr.mxu0 0.0
          %361 = vmatpush1.msra.mxu0 0.0
          %362 = vmatprep.subr.mxu0 0.0
          %363 = vmatpush1.msra.mxu0 0.0
          %364 = vmatprep.subr.mxu0 0.0
          %365 = vmatpush1.msra.mxu0 %v291
          %366 = vmatprep.subr.mxu0 0.0
          %367 = vmatpush1.msra.mxu0 %v290
          %368 = vmatprep.subr.mxu0 0.0
          %369 = vmatpush1.msra.mxu0 %v289
          %370 = vmatprep.subr.mxu0 0.0
          %371 = vmatpush1.msra.mxu0 %v288
          %372 = vmatprep.subr.mxu0 0.0
          %373 = vmatpush2.msra.mxu0 0.0
          %374 = vmatprep.subr.mxu0 0.0
          %375 = vmatpush2.msra.mxu0 0.0
          %376 = vmatprep.subr.mxu0 0.0
          %377 = vmatpush2.msra.mxu0 0.0
          %378 = vmatprep.subr.mxu0 0.0
          %379 = vmatpush2.msra.mxu0 0.0
          %380 = vmatprep.subr.mxu0 0.0
          %381 = vmatpush2.msra.mxu0 0.0
          %382 = vmatprep.subr.mxu0 0.0
          %383 = vmatpush2.msra.mxu0 0.0
          %384 = vmatprep.subr.mxu0 0.0
          %385 = vmatpush2.msra.mxu0 0.0
          %386 = vmatprep.subr.mxu0 0.0
          %387 = vmatpush2.msra.mxu0 0.0
          %388 = vmatprep.subr.mxu0 0.0
          %389 = vmatpush2.msra.mxu0 0.0
          %390 = vmatprep.subr.mxu0 0.0
          %391 = vmatpush2.msra.mxu0 0.0
          %392 = vmatprep.subr.mxu0 0.0
          %393 = vmatpush2.msra.mxu0 0.0
          %394 = vmatprep.subr.mxu0 0.0
          %395 = vmatpush2.msra.mxu0 0.0
          %396 = vmatprep.subr.mxu0 0.0
          %397 = vmatpush2.msra.mxu0 0.0
          %398 = vmatprep.subr.mxu0 0.0
          %399 = vmatpush2.msra.mxu0 0.0
          %400 = vmatprep.subr.mxu0 0.0
          %401 = vmatpush2.msra.mxu0 0.0
          %402 = vmatprep.subr.mxu0 0.0
          %403 = vmatpush2.msra.mxu0 0.0
          %404 = vmatprep.mubr.f32.mxu0 0.0
          %405 = vmatmul.mubr.f32.gmra.mxu0 %v317
          %v406 = vpop.f32.mrf.mxu0
          %v407 = vadd.f32 %v313, %v406
          %v408 = vpop.f32.mrf.mxu0
          %409 = vmatprep.mubr.f32.mxu0 0.0
          %410 = vmatmul.mubr.f32.gmra.mxu0 %v320
          %v411 = vpop.f32.mrf.mxu0
          %v412 = vadd.f32 %v313, %v411
          %v413 = vpop.f32.mrf.mxu0
          %414 = vmatprep.mubr.f32.mxu0 0.0
          %415 = vmatmul.mubr.f32.gmra.mxu0 %v323
          %v416 = vpop.f32.mrf.mxu0
          %v417 = vadd.f32 %v313, %v416
          %v418 = vpop.f32.mrf.mxu0
          %419 = vmatprep.mubr.f32.mxu0 0.0
          %420 = vmatmul.mubr.f32.gmra.mxu0 %v326
          %v421 = vpop.f32.mrf.mxu0
          %v422 = vadd.f32 %v313, %v421
          %v423 = vpop.f32.mrf.mxu0
          %424 = vmatprep.mubr.f32.mxu0 0.0
          %425 = vmatmul.mubr.f32.gmra.mxu0 %v329
          %v426 = vpop.f32.mrf.mxu0
          %v427 = vadd.f32 %v313, %v426
          %v428 = vpop.f32.mrf.mxu0
          %429 = vmatprep.mubr.f32.mxu0 0.0
          %430 = vmatmul.mubr.f32.gmra.mxu0 %v332
          %v431 = vpop.f32.mrf.mxu0
          %v432 = vadd.f32 %v313, %v431
          %v433 = vpop.f32.mrf.mxu0
          %434 = vmatprep.mubr.f32.mxu0 0.0
          %435 = vmatmul.mubr.f32.gmra.mxu0 %v335
          %v436 = vpop.f32.mrf.mxu0
          %v437 = vadd.f32 %v313, %v436
          %v438 = vpop.f32.mrf.mxu0
          %439 = vmatprep.mubr.f32.mxu0 0.0
          %440 = vmatmul.mubr.f32.gmra.mxu0 %v338
          %v441 = vpop.f32.mrf.mxu0
          %v442 = vadd.f32 %v313, %v441
          %v443 = vpop.f32.mrf.mxu0
          %444 = vdwg.mxu0
          %445 = vst [vmem:[#allocation3] sm:$0xff] %v407
          %446 = vst [vmem:[#allocation3 + $0x8] sm:$0xff] %v412
          %447 = vst [vmem:[#allocation3 + $0x10] sm:$0xff] %v417
          %448 = vst [vmem:[#allocation3 + $0x18] sm:$0xff] %v422
          %449 = vst [vmem:[#allocation3 + $0x20] sm:$0xff] %v427
          %450 = vst [vmem:[#allocation3 + $0x28] sm:$0xff] %v432
          %451 = vst [vmem:[#allocation3 + $0x30] sm:$0xff] %v437
          %452 = vst [vmem:[#allocation3 + $0x38] sm:$0xff] %v442
        $region44: #{encoder_forward.1} parent=35 // pred_fallthru
          _
        %p453 = scmp.gt.s32.totalorder %s20, 0
        // Predicated region
        $region45: #{encoder_forward.1} parent=35 // pred_check
          %p454 = pneg %p453
        $region46: #{encoder_forward.1} parent=35 // pred_check_branch
          %456 = sbr.rel (%p454) target = $region48
        $region47: #{encoder_forward.1} parent=35 // pred_region
          %v457 = vld [vmem:[#allocation2] sm:$0xff]
          %v458 = vld [vmem:[#allocation2 + $0x8] sm:$0xff]
          %v459 = vld [vmem:[#allocation2 + $0x10] sm:$0xff]
          %v460 = vld [vmem:[#allocation2 + $0x18] sm:$0xff]
          %v461 = vld [vmem:[#allocation2 + $0x20] sm:$0xff]
          %v462 = vld [vmem:[#allocation2 + $0x28] sm:$0xff]
          %v463 = vld [vmem:[#allocation2 + $0x30] sm:$0xff]
          %v464 = vld [vmem:[#allocation2 + $0x38] sm:$0xff]
          %v466 = vlaneseq
          %v467 = vshrl.u32 %v466, 7
          %v468 = vsub.s32 0, %v467
          %v469 = vrot.slane %v296, %v468
          %vm471 = vcmask 261120
          %v473 = vsel %vm471, %v457, 0
          %v476 = vsel %vm471, %v458, 0
          %v479 = vsel %vm471, %v459, 0
          %v482 = vsel %vm471, %v460, 0
          %v485 = vsel %vm471, %v461, 0
          %v488 = vsel %vm471, %v462, 0
          %v491 = vsel %vm471, %v463, 0
          %v494 = vsel %vm471, %v464, 0
          %496 = vmatprep.subr.mxu0 0.0
          %497 = vmatpush1.msra.mxu0 0.0
          %498 = vmatprep.subr.mxu0 0.0
          %499 = vmatpush1.msra.mxu0 0.0
          %500 = vmatprep.subr.mxu0 0.0
          %501 = vmatpush1.msra.mxu0 0.0
          %502 = vmatprep.subr.mxu0 0.0
          %503 = vmatpush1.msra.mxu0 0.0
          %504 = vmatprep.subr.mxu0 0.0
          %505 = vmatpush1.msra.mxu0 0.0
          %506 = vmatprep.subr.mxu0 0.0
          %507 = vmatpush1.msra.mxu0 0.0
          %508 = vmatprep.subr.mxu0 0.0
          %509 = vmatpush1.msra.mxu0 0.0
          %510 = vmatprep.subr.mxu0 0.0
          %511 = vmatpush1.msra.mxu0 0.0
          %512 = vmatprep.subr.mxu0 0.0
          %513 = vmatpush1.msra.mxu0 0.0
          %514 = vmatprep.subr.mxu0 0.0
          %515 = vmatpush1.msra.mxu0 0.0
          %516 = vmatprep.subr.mxu0 0.0
          %517 = vmatpush1.msra.mxu0 0.0
          %518 = vmatprep.subr.mxu0 0.0
          %519 = vmatpush1.msra.mxu0 0.0
          %520 = vmatprep.subr.mxu0 0.0
          %521 = vmatpush1.msra.mxu0 %v291
          %522 = vmatprep.subr.mxu0 0.0
          %523 = vmatpush1.msra.mxu0 %v290
          %524 = vmatprep.subr.mxu0 0.0
          %525 = vmatpush1.msra.mxu0 %v289
          %526 = vmatprep.subr.mxu0 0.0
          %527 = vmatpush1.msra.mxu0 %v288
          %528 = vmatprep.subr.mxu0 0.0
          %529 = vmatpush2.msra.mxu0 0.0
          %530 = vmatprep.subr.mxu0 0.0
          %531 = vmatpush2.msra.mxu0 0.0
          %532 = vmatprep.subr.mxu0 0.0
          %533 = vmatpush2.msra.mxu0 0.0
          %534 = vmatprep.subr.mxu0 0.0
          %535 = vmatpush2.msra.mxu0 0.0
          %536 = vmatprep.subr.mxu0 0.0
          %537 = vmatpush2.msra.mxu0 0.0
          %538 = vmatprep.subr.mxu0 0.0
          %539 = vmatpush2.msra.mxu0 0.0
          %540 = vmatprep.subr.mxu0 0.0
          %541 = vmatpush2.msra.mxu0 0.0
          %542 = vmatprep.subr.mxu0 0.0
          %543 = vmatpush2.msra.mxu0 0.0
          %544 = vmatprep.subr.mxu0 0.0
          %545 = vmatpush2.msra.mxu0 0.0
          %546 = vmatprep.subr.mxu0 0.0
          %547 = vmatpush2.msra.mxu0 0.0
          %548 = vmatprep.subr.mxu0 0.0
          %549 = vmatpush2.msra.mxu0 0.0
          %550 = vmatprep.subr.mxu0 0.0
          %551 = vmatpush2.msra.mxu0 0.0
          %552 = vmatprep.subr.mxu0 0.0
          %553 = vmatpush2.msra.mxu0 0.0
          %554 = vmatprep.subr.mxu0 0.0
          %555 = vmatpush2.msra.mxu0 0.0
          %556 = vmatprep.subr.mxu0 0.0
          %557 = vmatpush2.msra.mxu0 0.0
          %558 = vmatprep.subr.mxu0 0.0
          %559 = vmatpush2.msra.mxu0 0.0
          %560 = vmatprep.mubr.f32.mxu0 0.0
          %561 = vmatmul.mubr.f32.gmra.mxu0 %v473
          %v562 = vpop.f32.mrf.mxu0
          %v563 = vadd.f32 %v469, %v562
          %v564 = vpop.f32.mrf.mxu0
          %565 = vmatprep.mubr.f32.mxu0 0.0
          %566 = vmatmul.mubr.f32.gmra.mxu0 %v476
          %v567 = vpop.f32.mrf.mxu0
          %v568 = vadd.f32 %v469, %v567
          %v569 = vpop.f32.mrf.mxu0
          %570 = vmatprep.mubr.f32.mxu0 0.0
          %571 = vmatmul.mubr.f32.gmra.mxu0 %v479
          %v572 = vpop.f32.mrf.mxu0
          %v573 = vadd.f32 %v469, %v572
          %v574 = vpop.f32.mrf.mxu0
          %575 = vmatprep.mubr.f32.mxu0 0.0
          %576 = vmatmul.mubr.f32.gmra.mxu0 %v482
          %v577 = vpop.f32.mrf.mxu0
          %v578 = vadd.f32 %v469, %v577
          %v579 = vpop.f32.mrf.mxu0
          %580 = vmatprep.mubr.f32.mxu0 0.0
          %581 = vmatmul.mubr.f32.gmra.mxu0 %v485
          %v582 = vpop.f32.mrf.mxu0
          %v583 = vadd.f32 %v469, %v582
          %v584 = vpop.f32.mrf.mxu0
          %585 = vmatprep.mubr.f32.mxu0 0.0
          %586 = vmatmul.mubr.f32.gmra.mxu0 %v488
          %v587 = vpop.f32.mrf.mxu0
          %v588 = vadd.f32 %v469, %v587
          %v589 = vpop.f32.mrf.mxu0
          %590 = vmatprep.mubr.f32.mxu0 0.0
          %591 = vmatmul.mubr.f32.gmra.mxu0 %v491
          %v592 = vpop.f32.mrf.mxu0
          %v593 = vadd.f32 %v469, %v592
          %v594 = vpop.f32.mrf.mxu0
          %595 = vmatprep.mubr.f32.mxu0 0.0
          %596 = vmatmul.mubr.f32.gmra.mxu0 %v494
          %v597 = vpop.f32.mrf.mxu0
          %v598 = vadd.f32 %v469, %v597
          %v599 = vpop.f32.mrf.mxu0
          %600 = vdwg.mxu0
          %601 = vst [vmem:[#allocation3] sm:$0xff] %v563
          %602 = vst [vmem:[#allocation3 + $0x8] sm:$0xff] %v568
          %603 = vst [vmem:[#allocation3 + $0x10] sm:$0xff] %v573
          %604 = vst [vmem:[#allocation3 + $0x18] sm:$0xff] %v578
          %605 = vst [vmem:[#allocation3 + $0x20] sm:$0xff] %v583
          %606 = vst [vmem:[#allocation3 + $0x28] sm:$0xff] %v588
          %607 = vst [vmem:[#allocation3 + $0x30] sm:$0xff] %v593
          %608 = vst [vmem:[#allocation3 + $0x38] sm:$0xff] %v598
        $region48: #{encoder_forward.1} parent=35 // pred_fallthru
          _
        %v609 = vld [vmem:[#allocation3] sm:$0xff]
        %v610 = vxor.u32 %v609, 2147483648
        %v611 = vmul.f32 %v610, 1.442695
        %v612 = vpow.pop %v611
        %v613 = vadd.f32 %v612, 1.0
        %v614 = vrcp.pop %v613
        %v615 = vmul.f32 1.0, %v614
        %v616 = vtanh.pop %v609
        %v617 = vmul.f32 %v615, 0.0
        %619 = vrot.lane.b32.xlu0 %v616, 64
        %v620 = vpop.permute.xlu0 %619
        %v622 = vmul.f32 %v615, %v620
        %624 = vrot.lane.b32.xlu0 %v622, 32
        %v625 = vpop.permute.xlu0 %624
        %v627 = vadd.f32 %v617, %v625
        %v628 = vtanh.pop %v627
        %630 = vrot.lane.b32.xlu0 %v628, 64
        %v631 = vpop.permute.xlu0 %630
        %v633 = vmul.f32 %v615, %v631
        %635 = vrot.lane.b32.xlu0 %v633, 32
        %v636 = vpop.permute.xlu0 %635
        %vm638 = vcmask 261120
        %639 = vst.msk [vmem:[#allocation2] sm:$0xff] %vm638, %v636
        %v640 = vld [vmem:[#allocation3 + $0x8] sm:$0xff]
        %v641 = vsel %vm638, %v636, 0
        %643 = vmatprep.subr.mxu0 0.0
        %644 = vmatpush1.msra.mxu0 0.0
        %645 = vmatprep.subr.mxu0 0.0
        %646 = vmatpush1.msra.mxu0 0.0
        %647 = vmatprep.subr.mxu0 0.0
        %648 = vmatpush1.msra.mxu0 0.0
        %649 = vmatprep.subr.mxu0 0.0
        %650 = vmatpush1.msra.mxu0 0.0
        %651 = vmatprep.subr.mxu0 0.0
        %652 = vmatpush1.msra.mxu0 0.0
        %653 = vmatprep.subr.mxu0 0.0
        %654 = vmatpush1.msra.mxu0 0.0
        %655 = vmatprep.subr.mxu0 0.0
        %656 = vmatpush1.msra.mxu0 0.0
        %657 = vmatprep.subr.mxu0 0.0
        %658 = vmatpush1.msra.mxu0 0.0
        %659 = vmatprep.subr.mxu0 0.0
        %660 = vmatpush1.msra.mxu0 0.0
        %661 = vmatprep.subr.mxu0 0.0
        %662 = vmatpush1.msra.mxu0 0.0
        %663 = vmatprep.subr.mxu0 0.0
        %664 = vmatpush1.msra.mxu0 0.0
        %665 = vmatprep.subr.mxu0 0.0
        %666 = vmatpush1.msra.mxu0 0.0
        %667 = vmatprep.subr.mxu0 0.0
        %668 = vmatpush1.msra.mxu0 %v295
        %669 = vmatprep.subr.mxu0 0.0
        %670 = vmatpush1.msra.mxu0 %v294
        %671 = vmatprep.subr.mxu0 0.0
        %672 = vmatpush1.msra.mxu0 %v293
        %673 = vmatprep.subr.mxu0 0.0
        %674 = vmatpush1.msra.mxu0 %v292
        %675 = vmatprep.subr.mxu0 0.0
        %676 = vmatpush2.msra.mxu0 0.0
        %677 = vmatprep.subr.mxu0 0.0
        %678 = vmatpush2.msra.mxu0 0.0
        %679 = vmatprep.subr.mxu0 0.0
        %680 = vmatpush2.msra.mxu0 0.0
        %681 = vmatprep.subr.mxu0 0.0
        %682 = vmatpush2.msra.mxu0 0.0
        %683 = vmatprep.subr.mxu0 0.0
        %684 = vmatpush2.msra.mxu0 0.0
        %685 = vmatprep.subr.mxu0 0.0
        %686 = vmatpush2.msra.mxu0 0.0
        %687 = vmatprep.subr.mxu0 0.0
        %688 = vmatpush2.msra.mxu0 0.0
        %689 = vmatprep.subr.mxu0 0.0
        %690 = vmatpush2.msra.mxu0 0.0
        %691 = vmatprep.subr.mxu0 0.0
        %692 = vmatpush2.msra.mxu0 0.0
        %693 = vmatprep.subr.mxu0 0.0
        %694 = vmatpush2.msra.mxu0 0.0
        %695 = vmatprep.subr.mxu0 0.0
        %696 = vmatpush2.msra.mxu0 0.0
        %697 = vmatprep.subr.mxu0 0.0
        %698 = vmatpush2.msra.mxu0 0.0
        %699 = vmatprep.subr.mxu0 0.0
        %700 = vmatpush2.msra.mxu0 0.0
        %701 = vmatprep.subr.mxu0 0.0
        %702 = vmatpush2.msra.mxu0 0.0
        %703 = vmatprep.subr.mxu0 0.0
        %704 = vmatpush2.msra.mxu0 0.0
        %705 = vmatprep.subr.mxu0 0.0
        %706 = vmatpush2.msra.mxu0 0.0
        %707 = vmatprep.mubr.f32.mxu0 0.0
        %708 = vmatmul.mubr.f32.gmra.mxu0 %v641
        %v709 = vpop.f32.mrf.mxu0
        %v710 = vadd.f32 %v640, %v709
        %v711 = vpop.f32.mrf.mxu0
        %712 = vdwg.mxu0
        %v713 = vxor.u32 %v710, 2147483648
        %v714 = vmul.f32 %v713, 1.442695
        %v715 = vpow.pop %v714
        %v716 = vadd.f32 %v715, 1.0
        %v717 = vrcp.pop %v716
        %v718 = vmul.f32 1.0, %v717
        %v719 = vtanh.pop %v710
        %v720 = vmul.f32 %v718, %v627
        %722 = vrot.lane.b32.xlu0 %v719, 64
        %v723 = vpop.permute.xlu0 %722
        %v725 = vmul.f32 %v718, %v723
        %727 = vrot.lane.b32.xlu0 %v725, 32
        %v728 = vpop.permute.xlu0 %727
        %v730 = vadd.f32 %v720, %v728
        %v731 = vtanh.pop %v730
        %733 = vrot.lane.b32.xlu0 %v731, 64
        %v734 = vpop.permute.xlu0 %733
        %v736 = vmul.f32 %v718, %v734
        %738 = vrot.lane.b32.xlu0 %v736, 32
        %v739 = vpop.permute.xlu0 %738
        %741 = vst.msk [vmem:[#allocation2 + $0x8] sm:$0xff] %vm638, %v739
        %v742 = vld [vmem:[#allocation3 + $0x10] sm:$0xff]
        %v743 = vsel %vm638, %v739, 0
        %745 = vmatprep.subr.mxu0 0.0
        %746 = vmatpush1.msra.mxu0 0.0
        %747 = vmatprep.subr.mxu0 0.0
        %748 = vmatpush1.msra.mxu0 0.0
        %749 = vmatprep.subr.mxu0 0.0
        %750 = vmatpush1.msra.mxu0 0.0
        %751 = vmatprep.subr.mxu0 0.0
        %752 = vmatpush1.msra.mxu0 0.0
        %753 = vmatprep.subr.mxu0 0.0
        %754 = vmatpush1.msra.mxu0 0.0
        %755 = vmatprep.subr.mxu0 0.0
        %756 = vmatpush1.msra.mxu0 0.0
        %757 = vmatprep.subr.mxu0 0.0
        %758 = vmatpush1.msra.mxu0 0.0
        %759 = vmatprep.subr.mxu0 0.0
        %760 = vmatpush1.msra.mxu0 0.0
        %761 = vmatprep.subr.mxu0 0.0
        %762 = vmatpush1.msra.mxu0 0.0
        %763 = vmatprep.subr.mxu0 0.0
        %764 = vmatpush1.msra.mxu0 0.0
        %765 = vmatprep.subr.mxu0 0.0
        %766 = vmatpush1.msra.mxu0 0.0
        %767 = vmatprep.subr.mxu0 0.0
        %768 = vmatpush1.msra.mxu0 0.0
        %769 = vmatprep.subr.mxu0 0.0
        %770 = vmatpush1.msra.mxu0 %v295
        %771 = vmatprep.subr.mxu0 0.0
        %772 = vmatpush1.msra.mxu0 %v294
        %773 = vmatprep.subr.mxu0 0.0
        %774 = vmatpush1.msra.mxu0 %v293
        %775 = vmatprep.subr.mxu0 0.0
        %776 = vmatpush1.msra.mxu0 %v292
        %777 = vmatprep.subr.mxu0 0.0
        %778 = vmatpush2.msra.mxu0 0.0
        %779 = vmatprep.subr.mxu0 0.0
        %780 = vmatpush2.msra.mxu0 0.0
        %781 = vmatprep.subr.mxu0 0.0
        %782 = vmatpush2.msra.mxu0 0.0
        %783 = vmatprep.subr.mxu0 0.0
        %784 = vmatpush2.msra.mxu0 0.0
        %785 = vmatprep.subr.mxu0 0.0
        %786 = vmatpush2.msra.mxu0 0.0
        %787 = vmatprep.subr.mxu0 0.0
        %788 = vmatpush2.msra.mxu0 0.0
        %789 = vmatprep.subr.mxu0 0.0
        %790 = vmatpush2.msra.mxu0 0.0
        %791 = vmatprep.subr.mxu0 0.0
        %792 = vmatpush2.msra.mxu0 0.0
        %793 = vmatprep.subr.mxu0 0.0
        %794 = vmatpush2.msra.mxu0 0.0
        %795 = vmatprep.subr.mxu0 0.0
        %796 = vmatpush2.msra.mxu0 0.0
        %797 = vmatprep.subr.mxu0 0.0
        %798 = vmatpush2.msra.mxu0 0.0
        %799 = vmatprep.subr.mxu0 0.0
        %800 = vmatpush2.msra.mxu0 0.0
        %801 = vmatprep.subr.mxu0 0.0
        %802 = vmatpush2.msra.mxu0 0.0
        %803 = vmatprep.subr.mxu0 0.0
        %804 = vmatpush2.msra.mxu0 0.0
        %805 = vmatprep.subr.mxu0 0.0
        %806 = vmatpush2.msra.mxu0 0.0
        %807 = vmatprep.subr.mxu0 0.0
        %808 = vmatpush2.msra.mxu0 0.0
        %809 = vmatprep.mubr.f32.mxu0 0.0
        %810 = vmatmul.mubr.f32.gmra.mxu0 %v743
        %v811 = vpop.f32.mrf.mxu0
        %v812 = vadd.f32 %v742, %v811
        %v813 = vpop.f32.mrf.mxu0
        %814 = vdwg.mxu0
        %v815 = vxor.u32 %v812, 2147483648
        %v816 = vmul.f32 %v815, 1.442695
        %v817 = vpow.pop %v816
        %v818 = vadd.f32 %v817, 1.0
        %v819 = vrcp.pop %v818
        %v820 = vmul.f32 1.0, %v819
        %v821 = vtanh.pop %v812
        %v822 = vmul.f32 %v820, %v730
        %824 = vrot.lane.b32.xlu0 %v821, 64
        %v825 = vpop.permute.xlu0 %824
        %v827 = vmul.f32 %v820, %v825
        %829 = vrot.lane.b32.xlu0 %v827, 32
        %v830 = vpop.permute.xlu0 %829
        %v832 = vadd.f32 %v822, %v830
        %v833 = vtanh.pop %v832
        %835 = vrot.lane.b32.xlu0 %v833, 64
        %v836 = vpop.permute.xlu0 %835
        %v838 = vmul.f32 %v820, %v836
        %840 = vrot.lane.b32.xlu0 %v838, 32
        %v841 = vpop.permute.xlu0 %840
        %843 = vst.msk [vmem:[#allocation2 + $0x10] sm:$0xff] %vm638, %v841
        %v844 = vld [vmem:[#allocation3 + $0x18] sm:$0xff]
        %v845 = vsel %vm638, %v841, 0
        %847 = vmatprep.subr.mxu0 0.0
        %848 = vmatpush1.msra.mxu0 0.0
        %849 = vmatprep.subr.mxu0 0.0
        %850 = vmatpush1.msra.mxu0 0.0
        %851 = vmatprep.subr.mxu0 0.0
        %852 = vmatpush1.msra.mxu0 0.0
        %853 = vmatprep.subr.mxu0 0.0
        %854 = vmatpush1.msra.mxu0 0.0
        %855 = vmatprep.subr.mxu0 0.0
        %856 = vmatpush1.msra.mxu0 0.0
        %857 = vmatprep.subr.mxu0 0.0
        %858 = vmatpush1.msra.mxu0 0.0
        %859 = vmatprep.subr.mxu0 0.0
        %860 = vmatpush1.msra.mxu0 0.0
        %861 = vmatprep.subr.mxu0 0.0
        %862 = vmatpush1.msra.mxu0 0.0
        %863 = vmatprep.subr.mxu0 0.0
        %864 = vmatpush1.msra.mxu0 0.0
        %865 = vmatprep.subr.mxu0 0.0
        %866 = vmatpush1.msra.mxu0 0.0
        %867 = vmatprep.subr.mxu0 0.0
        %868 = vmatpush1.msra.mxu0 0.0
        %869 = vmatprep.subr.mxu0 0.0
        %870 = vmatpush1.msra.mxu0 0.0
        %871 = vmatprep.subr.mxu0 0.0
        %872 = vmatpush1.msra.mxu0 %v295
        %873 = vmatprep.subr.mxu0 0.0
        %874 = vmatpush1.msra.mxu0 %v294
        %875 = vmatprep.subr.mxu0 0.0
        %876 = vmatpush1.msra.mxu0 %v293
        %877 = vmatprep.subr.mxu0 0.0
        %878 = vmatpush1.msra.mxu0 %v292
        %879 = vmatprep.subr.mxu0 0.0
        %880 = vmatpush2.msra.mxu0 0.0
        %881 = vmatprep.subr.mxu0 0.0
        %882 = vmatpush2.msra.mxu0 0.0
        %883 = vmatprep.subr.mxu0 0.0
        %884 = vmatpush2.msra.mxu0 0.0
        %885 = vmatprep.subr.mxu0 0.0
        %886 = vmatpush2.msra.mxu0 0.0
        %887 = vmatprep.subr.mxu0 0.0
        %888 = vmatpush2.msra.mxu0 0.0
        %889 = vmatprep.subr.mxu0 0.0
        %890 = vmatpush2.msra.mxu0 0.0
        %891 = vmatprep.subr.mxu0 0.0
        %892 = vmatpush2.msra.mxu0 0.0
        %893 = vmatprep.subr.mxu0 0.0
        %894 = vmatpush2.msra.mxu0 0.0
        %895 = vmatprep.subr.mxu0 0.0
        %896 = vmatpush2.msra.mxu0 0.0
        %897 = vmatprep.subr.mxu0 0.0
        %898 = vmatpush2.msra.mxu0 0.0
        %899 = vmatprep.subr.mxu0 0.0
        %900 = vmatpush2.msra.mxu0 0.0
        %901 = vmatprep.subr.mxu0 0.0
        %902 = vmatpush2.msra.mxu0 0.0
        %903 = vmatprep.subr.mxu0 0.0
        %904 = vmatpush2.msra.mxu0 0.0
        %905 = vmatprep.subr.mxu0 0.0
        %906 = vmatpush2.msra.mxu0 0.0
        %907 = vmatprep.subr.mxu0 0.0
        %908 = vmatpush2.msra.mxu0 0.0
        %909 = vmatprep.subr.mxu0 0.0
        %910 = vmatpush2.msra.mxu0 0.0
        %911 = vmatprep.mubr.f32.mxu0 0.0
        %912 = vmatmul.mubr.f32.gmra.mxu0 %v845
        %v913 = vpop.f32.mrf.mxu0
        %v914 = vadd.f32 %v844, %v913
        %v915 = vpop.f32.mrf.mxu0
        %916 = vdwg.mxu0
        %v917 = vxor.u32 %v914, 2147483648
        %v918 = vmul.f32 %v917, 1.442695
        %v919 = vpow.pop %v918
        %v920 = vadd.f32 %v919, 1.0
        %v921 = vrcp.pop %v920
        %v922 = vmul.f32 1.0, %v921
        %v923 = vtanh.pop %v914
        %v924 = vmul.f32 %v922, %v832
        %926 = vrot.lane.b32.xlu0 %v923, 64
        %v927 = vpop.permute.xlu0 %926
        %v929 = vmul.f32 %v922, %v927
        %931 = vrot.lane.b32.xlu0 %v929, 32
        %v932 = vpop.permute.xlu0 %931
        %v934 = vadd.f32 %v924, %v932
        %v935 = vtanh.pop %v934
        %937 = vrot.lane.b32.xlu0 %v935, 64
        %v938 = vpop.permute.xlu0 %937
        %v940 = vmul.f32 %v922, %v938
        %942 = vrot.lane.b32.xlu0 %v940, 32
        %v943 = vpop.permute.xlu0 %942
        %945 = vst.msk [vmem:[#allocation2 + $0x18] sm:$0xff] %vm638, %v943
        %v946 = vld [vmem:[#allocation3 + $0x20] sm:$0xff]
        %v947 = vsel %vm638, %v943, 0
        %949 = vmatprep.subr.mxu0 0.0
        %950 = vmatpush1.msra.mxu0 0.0
        %951 = vmatprep.subr.mxu0 0.0
        %952 = vmatpush1.msra.mxu0 0.0
        %953 = vmatprep.subr.mxu0 0.0
        %954 = vmatpush1.msra.mxu0 0.0
        %955 = vmatprep.subr.mxu0 0.0
        %956 = vmatpush1.msra.mxu0 0.0
        %957 = vmatprep.subr.mxu0 0.0
        %958 = vmatpush1.msra.mxu0 0.0
        %959 = vmatprep.subr.mxu0 0.0
        %960 = vmatpush1.msra.mxu0 0.0
        %961 = vmatprep.subr.mxu0 0.0
        %962 = vmatpush1.msra.mxu0 0.0
        %963 = vmatprep.subr.mxu0 0.0
        %964 = vmatpush1.msra.mxu0 0.0
        %965 = vmatprep.subr.mxu0 0.0
        %966 = vmatpush1.msra.mxu0 0.0
        %967 = vmatprep.subr.mxu0 0.0
        %968 = vmatpush1.msra.mxu0 0.0
        %969 = vmatprep.subr.mxu0 0.0
        %970 = vmatpush1.msra.mxu0 0.0
        %971 = vmatprep.subr.mxu0 0.0
        %972 = vmatpush1.msra.mxu0 0.0
        %973 = vmatprep.subr.mxu0 0.0
        %974 = vmatpush1.msra.mxu0 %v295
        %975 = vmatprep.subr.mxu0 0.0
        %976 = vmatpush1.msra.mxu0 %v294
        %977 = vmatprep.subr.mxu0 0.0
        %978 = vmatpush1.msra.mxu0 %v293
        %979 = vmatprep.subr.mxu0 0.0
        %980 = vmatpush1.msra.mxu0 %v292
        %981 = vmatprep.subr.mxu0 0.0
        %982 = vmatpush2.msra.mxu0 0.0
        %983 = vmatprep.subr.mxu0 0.0
        %984 = vmatpush2.msra.mxu0 0.0
        %985 = vmatprep.subr.mxu0 0.0
        %986 = vmatpush2.msra.mxu0 0.0
        %987 = vmatprep.subr.mxu0 0.0
        %988 = vmatpush2.msra.mxu0 0.0
        %989 = vmatprep.subr.mxu0 0.0
        %990 = vmatpush2.msra.mxu0 0.0
        %991 = vmatprep.subr.mxu0 0.0
        %992 = vmatpush2.msra.mxu0 0.0
        %993 = vmatprep.subr.mxu0 0.0
        %994 = vmatpush2.msra.mxu0 0.0
        %995 = vmatprep.subr.mxu0 0.0
        %996 = vmatpush2.msra.mxu0 0.0
        %997 = vmatprep.subr.mxu0 0.0
        %998 = vmatpush2.msra.mxu0 0.0
        %999 = vmatprep.subr.mxu0 0.0
        %1000 = vmatpush2.msra.mxu0 0.0
        %1001 = vmatprep.subr.mxu0 0.0
        %1002 = vmatpush2.msra.mxu0 0.0
        %1003 = vmatprep.subr.mxu0 0.0
        %1004 = vmatpush2.msra.mxu0 0.0
        %1005 = vmatprep.subr.mxu0 0.0
        %1006 = vmatpush2.msra.mxu0 0.0
        %1007 = vmatprep.subr.mxu0 0.0
        %1008 = vmatpush2.msra.mxu0 0.0
        %1009 = vmatprep.subr.mxu0 0.0
        %1010 = vmatpush2.msra.mxu0 0.0
        %1011 = vmatprep.subr.mxu0 0.0
        %1012 = vmatpush2.msra.mxu0 0.0
        %1013 = vmatprep.mubr.f32.mxu0 0.0
        %1014 = vmatmul.mubr.f32.gmra.mxu0 %v947
        %v1015 = vpop.f32.mrf.mxu0
        %v1016 = vadd.f32 %v946, %v1015
        %v1017 = vpop.f32.mrf.mxu0
        %1018 = vdwg.mxu0
        %v1019 = vxor.u32 %v1016, 2147483648
        %v1020 = vmul.f32 %v1019, 1.442695
        %v1021 = vpow.pop %v1020
        %v1022 = vadd.f32 %v1021, 1.0
        %v1023 = vrcp.pop %v1022
        %v1024 = vmul.f32 1.0, %v1023
        %v1025 = vtanh.pop %v1016
        %v1026 = vmul.f32 %v1024, %v934
        %1028 = vrot.lane.b32.xlu0 %v1025, 64
        %v1029 = vpop.permute.xlu0 %1028
        %v1031 = vmul.f32 %v1024, %v1029
        %1033 = vrot.lane.b32.xlu0 %v1031, 32
        %v1034 = vpop.permute.xlu0 %1033
        %v1036 = vadd.f32 %v1026, %v1034
        %v1037 = vtanh.pop %v1036
        %1039 = vrot.lane.b32.xlu0 %v1037, 64
        %v1040 = vpop.permute.xlu0 %1039
        %v1042 = vmul.f32 %v1024, %v1040
        %1044 = vrot.lane.b32.xlu0 %v1042, 32
        %v1045 = vpop.permute.xlu0 %1044
        %1047 = vst.msk [vmem:[#allocation2 + $0x20] sm:$0xff] %vm638, %v1045
        %v1048 = vld [vmem:[#allocation3 + $0x28] sm:$0xff]
        %v1049 = vsel %vm638, %v1045, 0
        %1051 = vmatprep.subr.mxu0 0.0
        %1052 = vmatpush1.msra.mxu0 0.0
        %1053 = vmatprep.subr.mxu0 0.0
        %1054 = vmatpush1.msra.mxu0 0.0
        %1055 = vmatprep.subr.mxu0 0.0
        %1056 = vmatpush1.msra.mxu0 0.0
        %1057 = vmatprep.subr.mxu0 0.0
        %1058 = vmatpush1.msra.mxu0 0.0
        %1059 = vmatprep.subr.mxu0 0.0
        %1060 = vmatpush1.msra.mxu0 0.0
        %1061 = vmatprep.subr.mxu0 0.0
        %1062 = vmatpush1.msra.mxu0 0.0
        %1063 = vmatprep.subr.mxu0 0.0
        %1064 = vmatpush1.msra.mxu0 0.0
        %1065 = vmatprep.subr.mxu0 0.0
        %1066 = vmatpush1.msra.mxu0 0.0
        %1067 = vmatprep.subr.mxu0 0.0
        %1068 = vmatpush1.msra.mxu0 0.0
        %1069 = vmatprep.subr.mxu0 0.0
        %1070 = vmatpush1.msra.mxu0 0.0
        %1071 = vmatprep.subr.mxu0 0.0
        %1072 = vmatpush1.msra.mxu0 0.0
        %1073 = vmatprep.subr.mxu0 0.0
        %1074 = vmatpush1.msra.mxu0 0.0
        %1075 = vmatprep.subr.mxu0 0.0
        %1076 = vmatpush1.msra.mxu0 %v295
        %1077 = vmatprep.subr.mxu0 0.0
        %1078 = vmatpush1.msra.mxu0 %v294
        %1079 = vmatprep.subr.mxu0 0.0
        %1080 = vmatpush1.msra.mxu0 %v293
        %1081 = vmatprep.subr.mxu0 0.0
        %1082 = vmatpush1.msra.mxu0 %v292
        %1083 = vmatprep.subr.mxu0 0.0
        %1084 = vmatpush2.msra.mxu0 0.0
        %1085 = vmatprep.subr.mxu0 0.0
        %1086 = vmatpush2.msra.mxu0 0.0
        %1087 = vmatprep.subr.mxu0 0.0
        %1088 = vmatpush2.msra.mxu0 0.0
        %1089 = vmatprep.subr.mxu0 0.0
        %1090 = vmatpush2.msra.mxu0 0.0
        %1091 = vmatprep.subr.mxu0 0.0
        %1092 = vmatpush2.msra.mxu0 0.0
        %1093 = vmatprep.subr.mxu0 0.0
        %1094 = vmatpush2.msra.mxu0 0.0
        %1095 = vmatprep.subr.mxu0 0.0
        %1096 = vmatpush2.msra.mxu0 0.0
        %1097 = vmatprep.subr.mxu0 0.0
        %1098 = vmatpush2.msra.mxu0 0.0
        %1099 = vmatprep.subr.mxu0 0.0
        %1100 = vmatpush2.msra.mxu0 0.0
        %1101 = vmatprep.subr.mxu0 0.0
        %1102 = vmatpush2.msra.mxu0 0.0
        %1103 = vmatprep.subr.mxu0 0.0
        %1104 = vmatpush2.msra.mxu0 0.0
        %1105 = vmatprep.subr.mxu0 0.0
        %1106 = vmatpush2.msra.mxu0 0.0
        %1107 = vmatprep.subr.mxu0 0.0
        %1108 = vmatpush2.msra.mxu0 0.0
        %1109 = vmatprep.subr.mxu0 0.0
        %1110 = vmatpush2.msra.mxu0 0.0
        %1111 = vmatprep.subr.mxu0 0.0
        %1112 = vmatpush2.msra.mxu0 0.0
        %1113 = vmatprep.subr.mxu0 0.0
        %1114 = vmatpush2.msra.mxu0 0.0
        %1115 = vmatprep.mubr.f32.mxu0 0.0
        %1116 = vmatmul.mubr.f32.gmra.mxu0 %v1049
        %v1117 = vpop.f32.mrf.mxu0
        %v1118 = vadd.f32 %v1048, %v1117
        %v1119 = vpop.f32.mrf.mxu0
        %1120 = vdwg.mxu0
        %v1121 = vxor.u32 %v1118, 2147483648
        %v1122 = vmul.f32 %v1121, 1.442695
        %v1123 = vpow.pop %v1122
        %v1124 = vadd.f32 %v1123, 1.0
        %v1125 = vrcp.pop %v1124
        %v1126 = vmul.f32 1.0, %v1125
        %v1127 = vtanh.pop %v1118
        %v1128 = vmul.f32 %v1126, %v1036
        %1130 = vrot.lane.b32.xlu0 %v1127, 64
        %v1131 = vpop.permute.xlu0 %1130
        %v1133 = vmul.f32 %v1126, %v1131
        %1135 = vrot.lane.b32.xlu0 %v1133, 32
        %v1136 = vpop.permute.xlu0 %1135
        %v1138 = vadd.f32 %v1128, %v1136
        %v1139 = vtanh.pop %v1138
        %1141 = vrot.lane.b32.xlu0 %v1139, 64
        %v1142 = vpop.permute.xlu0 %1141
        %v1144 = vmul.f32 %v1126, %v1142
        %1146 = vrot.lane.b32.xlu0 %v1144, 32
        %v1147 = vpop.permute.xlu0 %1146
        %1149 = vst.msk [vmem:[#allocation2 + $0x28] sm:$0xff] %vm638, %v1147
        %v1150 = vld [vmem:[#allocation3 + $0x30] sm:$0xff]
        %v1151 = vsel %vm638, %v1147, 0
        %1153 = vmatprep.subr.mxu0 0.0
        %1154 = vmatpush1.msra.mxu0 0.0
        %1155 = vmatprep.subr.mxu0 0.0
        %1156 = vmatpush1.msra.mxu0 0.0
        %1157 = vmatprep.subr.mxu0 0.0
        %1158 = vmatpush1.msra.mxu0 0.0
        %1159 = vmatprep.subr.mxu0 0.0
        %1160 = vmatpush1.msra.mxu0 0.0
        %1161 = vmatprep.subr.mxu0 0.0
        %1162 = vmatpush1.msra.mxu0 0.0
        %1163 = vmatprep.subr.mxu0 0.0
        %1164 = vmatpush1.msra.mxu0 0.0
        %1165 = vmatprep.subr.mxu0 0.0
        %1166 = vmatpush1.msra.mxu0 0.0
        %1167 = vmatprep.subr.mxu0 0.0
        %1168 = vmatpush1.msra.mxu0 0.0
        %1169 = vmatprep.subr.mxu0 0.0
        %1170 = vmatpush1.msra.mxu0 0.0
        %1171 = vmatprep.subr.mxu0 0.0
        %1172 = vmatpush1.msra.mxu0 0.0
        %1173 = vmatprep.subr.mxu0 0.0
        %1174 = vmatpush1.msra.mxu0 0.0
        %1175 = vmatprep.subr.mxu0 0.0
        %1176 = vmatpush1.msra.mxu0 0.0
        %1177 = vmatprep.subr.mxu0 0.0
        %1178 = vmatpush1.msra.mxu0 %v295
        %1179 = vmatprep.subr.mxu0 0.0
        %1180 = vmatpush1.msra.mxu0 %v294
        %1181 = vmatprep.subr.mxu0 0.0
        %1182 = vmatpush1.msra.mxu0 %v293
        %1183 = vmatprep.subr.mxu0 0.0
        %1184 = vmatpush1.msra.mxu0 %v292
        %1185 = vmatprep.subr.mxu0 0.0
        %1186 = vmatpush2.msra.mxu0 0.0
        %1187 = vmatprep.subr.mxu0 0.0
        %1188 = vmatpush2.msra.mxu0 0.0
        %1189 = vmatprep.subr.mxu0 0.0
        %1190 = vmatpush2.msra.mxu0 0.0
        %1191 = vmatprep.subr.mxu0 0.0
        %1192 = vmatpush2.msra.mxu0 0.0
        %1193 = vmatprep.subr.mxu0 0.0
        %1194 = vmatpush2.msra.mxu0 0.0
        %1195 = vmatprep.subr.mxu0 0.0
        %1196 = vmatpush2.msra.mxu0 0.0
        %1197 = vmatprep.subr.mxu0 0.0
        %1198 = vmatpush2.msra.mxu0 0.0
        %1199 = vmatprep.subr.mxu0 0.0
        %1200 = vmatpush2.msra.mxu0 0.0
        %1201 = vmatprep.subr.mxu0 0.0
        %1202 = vmatpush2.msra.mxu0 0.0
        %1203 = vmatprep.subr.mxu0 0.0
        %1204 = vmatpush2.msra.mxu0 0.0
        %1205 = vmatprep.subr.mxu0 0.0
        %1206 = vmatpush2.msra.mxu0 0.0
        %1207 = vmatprep.subr.mxu0 0.0
        %1208 = vmatpush2.msra.mxu0 0.0
        %1209 = vmatprep.subr.mxu0 0.0
        %1210 = vmatpush2.msra.mxu0 0.0
        %1211 = vmatprep.subr.mxu0 0.0
        %1212 = vmatpush2.msra.mxu0 0.0
        %1213 = vmatprep.subr.mxu0 0.0
        %1214 = vmatpush2.msra.mxu0 0.0
        %1215 = vmatprep.subr.mxu0 0.0
        %1216 = vmatpush2.msra.mxu0 0.0
        %1217 = vmatprep.mubr.f32.mxu0 0.0
        %1218 = vmatmul.mubr.f32.gmra.mxu0 %v1151
        %v1219 = vpop.f32.mrf.mxu0
        %v1220 = vadd.f32 %v1150, %v1219
        %v1221 = vpop.f32.mrf.mxu0
        %1222 = vdwg.mxu0
        %v1223 = vxor.u32 %v1220, 2147483648
        %v1224 = vmul.f32 %v1223, 1.442695
        %v1225 = vpow.pop %v1224
        %v1226 = vadd.f32 %v1225, 1.0
        %v1227 = vrcp.pop %v1226
        %v1228 = vmul.f32 1.0, %v1227
        %v1229 = vtanh.pop %v1220
        %v1230 = vmul.f32 %v1228, %v1138
        %1232 = vrot.lane.b32.xlu0 %v1229, 64
        %v1233 = vpop.permute.xlu0 %1232
        %v1235 = vmul.f32 %v1228, %v1233
        %1237 = vrot.lane.b32.xlu0 %v1235, 32
        %v1238 = vpop.permute.xlu0 %1237
        %v1240 = vadd.f32 %v1230, %v1238
        %v1241 = vtanh.pop %v1240
        %1243 = vrot.lane.b32.xlu0 %v1241, 64
        %v1244 = vpop.permute.xlu0 %1243
        %v1246 = vmul.f32 %v1228, %v1244
        %1248 = vrot.lane.b32.xlu0 %v1246, 32
        %v1249 = vpop.permute.xlu0 %1248
        %1251 = vst.msk [vmem:[#allocation2 + $0x30] sm:$0xff] %vm638, %v1249
        %v1252 = vld [vmem:[#allocation3 + $0x38] sm:$0xff]
        %v1253 = vsel %vm638, %v1249, 0
        %1255 = vmatprep.subr.mxu0 0.0
        %1256 = vmatpush1.msra.mxu0 0.0
        %1257 = vmatprep.subr.mxu0 0.0
        %1258 = vmatpush1.msra.mxu0 0.0
        %1259 = vmatprep.subr.mxu0 0.0
        %1260 = vmatpush1.msra.mxu0 0.0
        %1261 = vmatprep.subr.mxu0 0.0
        %1262 = vmatpush1.msra.mxu0 0.0
        %1263 = vmatprep.subr.mxu0 0.0
        %1264 = vmatpush1.msra.mxu0 0.0
        %1265 = vmatprep.subr.mxu0 0.0
        %1266 = vmatpush1.msra.mxu0 0.0
        %1267 = vmatprep.subr.mxu0 0.0
        %1268 = vmatpush1.msra.mxu0 0.0
        %1269 = vmatprep.subr.mxu0 0.0
        %1270 = vmatpush1.msra.mxu0 0.0
        %1271 = vmatprep.subr.mxu0 0.0
        %1272 = vmatpush1.msra.mxu0 0.0
        %1273 = vmatprep.subr.mxu0 0.0
        %1274 = vmatpush1.msra.mxu0 0.0
        %1275 = vmatprep.subr.mxu0 0.0
        %1276 = vmatpush1.msra.mxu0 0.0
        %1277 = vmatprep.subr.mxu0 0.0
        %1278 = vmatpush1.msra.mxu0 0.0
        %1279 = vmatprep.subr.mxu0 0.0
        %1280 = vmatpush1.msra.mxu0 %v295
        %1281 = vmatprep.subr.mxu0 0.0
        %1282 = vmatpush1.msra.mxu0 %v294
        %1283 = vmatprep.subr.mxu0 0.0
        %1284 = vmatpush1.msra.mxu0 %v293
        %1285 = vmatprep.subr.mxu0 0.0
        %1286 = vmatpush1.msra.mxu0 %v292
        %1287 = vmatprep.subr.mxu0 0.0
        %1288 = vmatpush2.msra.mxu0 0.0
        %1289 = vmatprep.subr.mxu0 0.0
        %1290 = vmatpush2.msra.mxu0 0.0
        %1291 = vmatprep.subr.mxu0 0.0
        %1292 = vmatpush2.msra.mxu0 0.0
        %1293 = vmatprep.subr.mxu0 0.0
        %1294 = vmatpush2.msra.mxu0 0.0
        %1295 = vmatprep.subr.mxu0 0.0
        %1296 = vmatpush2.msra.mxu0 0.0
        %1297 = vmatprep.subr.mxu0 0.0
        %1298 = vmatpush2.msra.mxu0 0.0
        %1299 = vmatprep.subr.mxu0 0.0
        %1300 = vmatpush2.msra.mxu0 0.0
        %1301 = vmatprep.subr.mxu0 0.0
        %1302 = vmatpush2.msra.mxu0 0.0
        %1303 = vmatprep.subr.mxu0 0.0
        %1304 = vmatpush2.msra.mxu0 0.0
        %1305 = vmatprep.subr.mxu0 0.0
        %1306 = vmatpush2.msra.mxu0 0.0
        %1307 = vmatprep.subr.mxu0 0.0
        %1308 = vmatpush2.msra.mxu0 0.0
        %1309 = vmatprep.subr.mxu0 0.0
        %1310 = vmatpush2.msra.mxu0 0.0
        %1311 = vmatprep.subr.mxu0 0.0
        %1312 = vmatpush2.msra.mxu0 0.0
        %1313 = vmatprep.subr.mxu0 0.0
        %1314 = vmatpush2.msra.mxu0 0.0
        %1315 = vmatprep.subr.mxu0 0.0
        %1316 = vmatpush2.msra.mxu0 0.0
        %1317 = vmatprep.subr.mxu0 0.0
        %1318 = vmatpush2.msra.mxu0 0.0
        %1319 = vmatprep.mubr.f32.mxu0 0.0
        %1320 = vmatmul.mubr.f32.gmra.mxu0 %v1253
        %v1321 = vpop.f32.mrf.mxu0
        %v1322 = vadd.f32 %v1252, %v1321
        %v1323 = vpop.f32.mrf.mxu0
        %1324 = vdwg.mxu0
        %v1325 = vxor.u32 %v1322, 2147483648
        %v1326 = vmul.f32 %v1325, 1.442695
        %v1327 = vpow.pop %v1326
        %v1328 = vadd.f32 %v1327, 1.0
        %v1329 = vrcp.pop %v1328
        %v1330 = vmul.f32 1.0, %v1329
        %v1331 = vtanh.pop %v1322
        %v1332 = vmul.f32 %v1330, %v1240
        %1334 = vrot.lane.b32.xlu0 %v1331, 64
        %v1335 = vpop.permute.xlu0 %1334
        %v1337 = vmul.f32 %v1330, %v1335
        %1339 = vrot.lane.b32.xlu0 %v1337, 32
        %v1340 = vpop.permute.xlu0 %1339
        %v1342 = vadd.f32 %v1332, %v1340
        %v1343 = vtanh.pop %v1342
        %1345 = vrot.lane.b32.xlu0 %v1343, 64
        %v1346 = vpop.permute.xlu0 %1345
        %v1348 = vmul.f32 %v1330, %v1346
        %1350 = vrot.lane.b32.xlu0 %v1348, 32
        %v1351 = vpop.permute.xlu0 %1350
        %1353 = vst.msk [vmem:[#allocation2 + $0x38] sm:$0xff] %vm638, %v1351
        %1354 = vst.msk [vmem:[%s283] sm:$0xff] %vm638, %v1351
        %1356 = vrot.lane.b32.xlu0 %v1342, 96
        %v1357 = vpop.permute.xlu0 %1356
        %1359 = vst.msk [vmem:[%s287] sm:$0xff] %vm638, %v1357
        %p1360 = scmp.lt.s32.totalorder %s20, 1
        %s1361 = scalar_select %p1360, %s20, 1
        %s1362 = smul.addr %s1361, 8
        %s1363 = scalar_lea.vmem %s4, %s1362
        %p1364 = scmp.lt.s32.totalorder %s20, 1
        %s1365 = scalar_select %p1364, %s20, 1
        %s1366 = smul.addr %s1365, 8
        %s1367 = scalar_lea.vmem %s5, %s1366
        // Predicated region
        $region49: #{encoder_forward.1} parent=35 // pred_check
          %p1368 = pneg %p137
        $region50: #{encoder_forward.1} parent=35 // pred_check_branch
          %1370 = sbr.rel (%p1368) target = $region52
        $region51: #{encoder_forward.1} parent=35 // pred_region
          _
        $region52: #{encoder_forward.1} parent=35 // pred_fallthru
          _
        // Predicated region
        $region53: #{encoder_forward.1} parent=35 // pred_check
          %p1371 = pneg %p163
        $region54: #{encoder_forward.1} parent=35 // pred_check_branch
          %1373 = sbr.rel (%p1371) target = $region56
        $region55: #{encoder_forward.1} parent=35 // pred_region
          _
        $region56: #{encoder_forward.1} parent=35 // pred_fallthru
          _
      $region36: #{encoder_forward.1} parent=5 // pred_fallthru
        _
      %p1374 = scmp.le.s32.totalorder 2, %s15
      // Predicated region
      $region57: #{encoder_forward.1} parent=5 // pred_check
        %p1375 = pneg %p1374
      $region58: #{encoder_forward.1} parent=5 // pred_check_branch
        %1377 = sbr.rel (%p1375) target = $region60
      $region59: #{encoder_forward.1} parent=5 // pred_region
        %s1378 = ssub.s32 %s15, 2
        // Predicated region
        $region61: #{encoder_forward.1} parent=59 // pred_check
          %p1379 = pneg %p143
        $region62: #{encoder_forward.1} parent=59 // pred_check_branch
          %1381 = sbr.rel (%p1379) target = $region64
        $region63: #{encoder_forward.1} parent=59 // pred_region
          %p1382 = scmp.lt.s32.totalorder %s21, 1
          %s1383 = scalar_select %p1382, %s21, 1
          %s1384 = smul.addr %s1383, 8
          %s1385 = scalar_lea.vmem %s4, %s1384
        $region64: #{encoder_forward.1} parent=59 // pred_fallthru
          _
        // Predicated region
        $region65: #{encoder_forward.1} parent=59 // pred_check
          %p1386 = pneg %p169
        $region66: #{encoder_forward.1} parent=59 // pred_check_branch
          %1388 = sbr.rel (%p1386) target = $region68
        $region67: #{encoder_forward.1} parent=59 // pred_region
          %p1389 = scmp.lt.s32.totalorder %s21, 1
          %s1390 = scalar_select %p1389, %s21, 1
          %s1391 = smul.addr %s1390, 8
          %s1392 = scalar_lea.vmem %s5, %s1391
        $region68: #{encoder_forward.1} parent=59 // pred_fallthru
          _
      $region60: #{encoder_forward.1} parent=5 // pred_fallthru
        _
    $region6: #{encoder_forward.1} parent=1 // loop_footer
      %s19 = sadd.s32 1, %s15
    $region7: #{encoder_forward.1} parent=1 // loop_footer_branch
      %14 = sbr.rel target = $region3
    $region8: #{encoder_forward.1} parent=1 // loop_exit
      _
    %1393 = vsyncpa [#allocation5], 1
    %s1394 = scalar_lea.sflag [#allocation5], 1
    %1395 = vsyncpa %s1394, 1

</llo_original>
